<compile_context>
chip_gen: v6e
topology: v6e:2x2x1
jax: 0.10.0
libtpu: 0.0.40
codegen_flags: <defaults>
</compile_context>

<pallas_src>
import numpy as np
import jax
import jax.numpy as jnp
from jax import lax
from jax.experimental import pallas as pl
from jax.experimental.pallas import tpu as pltpu


def _channel_attention_kernel(x_ref, wf_ref, wb_ref, out_ref):
    x = x_ref[0]                                                     # (C, N)
    # F = Input_to_F(x):  (O, C) @ (C, N) -> (O, N)
    f = jnp.dot(wf_ref[...], x, preferred_element_type=jnp.float32)
    # scores_T[o, c] = sum_n F[o, n] * x[c, n]   (== torch.matmul(F, A)),
    # kept as (O, C) so the softmax axis (channels) is the lane axis.
    scores_t = lax.dot_general(f, x, (((1,), (1,)), ((), ())),
                               preferred_element_type=jnp.float32)   # (O, C)
    m = jnp.max(scores_t, axis=-1, keepdims=True)
    e = jnp.exp(scores_t - m)
    s_t = e / jnp.sum(e, axis=-1, keepdims=True)       # softmax over channels
    # E[c, n] = sum_o S[c, o] * F[o, n] = sum_o s_t[o, c] * F[o, n]
    attn = lax.dot_general(s_t, f, (((0,), (0,)), ((), ())),
                           preferred_element_type=jnp.float32)       # (C, N)
    # beta(E) + x
    out_ref[0] = jnp.dot(wb_ref[...], attn,
                         preferred_element_type=jnp.float32) + x


def channel_attention_forward(x, wf, wbeta):
    """x: (B, C, H, W); wf: (O, C); wbeta: (C, C)  ->  (B, C, H, W)."""
    B, C, H, W = x.shape
    N = H * W
    O = wf.shape[0]
    x2 = x.reshape(B, C, N)

    out = pl.pallas_call(
        _channel_attention_kernel,
        grid=(B,),
        in_specs=[
            pl.BlockSpec((1, C, N), lambda b: (b, 0, 0)),   # x, per-batch tile
            pl.BlockSpec((O, C), lambda b: (0, 0)),          # Input_to_F weight
            pl.BlockSpec((C, C), lambda b: (0, 0)),          # beta weight
        ],
        out_specs=pl.BlockSpec((1, C, N), lambda b: (b, 0, 0)),
        out_shape=jax.ShapeDtypeStruct((B, C, N), jnp.float32),
        compiler_params=pltpu.CompilerParams(
            dimension_semantics=("parallel",)),
    )(x2, wf, wbeta)
    return out.reshape(B, C, H, W)


def reference_forward(x, wf, wbeta):
    """Pure-JAX mirror of the PyTorch ChannelAttention.forward."""
    B, C, H, W = x.shape
    N = H * W
    x2 = x.reshape(B, C, N)
    F = jnp.einsum("oc,bcn->bon", wf, x2)                   # Input_to_F(x)
    A = jnp.transpose(x2, (0, 2, 1))                        # (B, N, C)
    S = jax.nn.softmax(jnp.matmul(F, A), axis=2)            # (B, O, C)
    S = jnp.transpose(S, (0, 2, 1))                         # (B, C, O)
    E = jnp.matmul(S, F)                                    # (B, C, N)
    out = jnp.einsum("oc,bcn->bon", wbeta, E) + x2          # beta(E) + x
    return out.reshape(B, C, H, W)


if __name__ == "__main__":
    key = jax.random.PRNGKey(0)
    kx, kf, kb = jax.random.split(key, 3)

    # ChannelAttention default `output` is 50; 64 keeps the (O, C) / (O, N)
    # tiles sublane-aligned without changing the module semantics.
    B, C, H, W = 2, 256, 16, 16
    O = 64

    x = jax.random.normal(kx, (B, C, H, W), jnp.float32)
    wf = jax.random.normal(kf, (O, C), jnp.float32) / jnp.sqrt(jnp.float32(C))
    wbeta = jax.random.normal(kb, (C, C), jnp.float32) / jnp.sqrt(jnp.float32(C))

    out = channel_attention_forward(x, wf, wbeta)
    out = jax.block_until_ready(out)

    ref = reference_forward(x, wf, wbeta)
    np.testing.assert_allclose(np.asarray(out), np.asarray(ref),
                               rtol=5e-3, atol=5e-3)
    print("KERNEL_OK")
</pallas_src>

<mosaic_0001>
module attributes {stable_mosaic.version = 11 : i64} {
  func.func @_channel_attention_kernel(%arg0: i32, %arg1: memref<1x256x256xf32, #tpu.memory_space<vmem>>, %arg2: memref<64x256xf32, #tpu.memory_space<vmem>>, %arg3: memref<256x256xf32, #tpu.memory_space<vmem>>, %arg4: memref<1x256x256xf32, #tpu.memory_space<vmem>>) attributes {dimension_semantics = [#tpu.dimension_semantics<parallel>], iteration_bounds = array<i64: 2>, scalar_prefetch = 0 : i64, scratch_operands = 0 : i64, tpu.core_type = #tpu.core_type<tc>, window_params = [{transform_indices = @transform_0, window_bounds = array<i64: 1, 256, 256>}, {pipeline_mode = #tpu.pipeline_mode<synchronous>, transform_indices = @transform_1, window_bounds = array<i64: 64, 256>}, {pipeline_mode = #tpu.pipeline_mode<synchronous>, transform_indices = @transform_2, window_bounds = array<i64: 256, 256>}, {transform_indices = @transform_3, window_bounds = array<i64: 1, 256, 256>}]} {
    %c0 = arith.constant 0 : index
    %c0_0 = arith.constant 0 : index
    %c0_1 = arith.constant 0 : index
    %0 = vector.load %arg1[%c0, %c0_0, %c0_1] : memref<1x256x256xf32, #tpu.memory_space<vmem>>, vector<1x256x256xf32>
    %1 = vector.shape_cast %0 : vector<1x256x256xf32> to vector<256x256xf32>
    %c0_2 = arith.constant 0 : index
    %c0_3 = arith.constant 0 : index
    %2 = vector.load %arg2[%c0_2, %c0_3] : memref<64x256xf32, #tpu.memory_space<vmem>>, vector<64x256xf32>
    %cst = arith.constant dense<0.000000e+00> : vector<64x256xf32>
    %3 = tpu.matmul %2, %1, %cst {dimension_numbers = #tpu.dot_dimension_numbers<[1], [0], [0], [1], [0, 0, 1, 1], [], []>} : vector<64x256xf32>, vector<256x256xf32>, vector<64x256xf32> -> vector<64x256xf32>
    %cst_4 = arith.constant dense<0.000000e+00> : vector<64x256xf32>
    %4 = tpu.matmul %3, %1, %cst_4 {dimension_numbers = #tpu.dot_dimension_numbers<[1], [1], [0], [0], [0, 0, 1, 0], [], []>} : vector<64x256xf32>, vector<256x256xf32>, vector<64x256xf32> -> vector<64x256xf32>
    %cst_5 = arith.constant dense<0xFF800000> : vector<64xf32>
    %5 = vector.multi_reduction <maximumf>, %4, %cst_5 [1] : vector<64x256xf32> to vector<64xf32>
    %6 = vector.shape_cast %5 : vector<64xf32> to vector<64x1xf32>
    %7 = vector.broadcast %6 : vector<64x1xf32> to vector<64x256xf32>
    %8 = arith.subf %4, %7 : vector<64x256xf32>
    %9 = math.exp %8 : vector<64x256xf32>
    %cst_6 = arith.constant dense<0.000000e+00> : vector<64xf32>
    %10 = vector.multi_reduction <add>, %9, %cst_6 [1] : vector<64x256xf32> to vector<64xf32>
    %11 = vector.shape_cast %10 : vector<64xf32> to vector<64x1xf32>
    %12 = vector.broadcast %11 : vector<64x1xf32> to vector<64x256xf32>
    %13 = arith.divf %9, %12 : vector<64x256xf32>
    %cst_7 = arith.constant dense<0.000000e+00> : vector<256x256xf32>
    %14 = tpu.matmul %13, %3, %cst_7 {dimension_numbers = #tpu.dot_dimension_numbers<[0], [0], [1], [1], [0, 1, 1, 1], [], []>} : vector<64x256xf32>, vector<64x256xf32>, vector<256x256xf32> -> vector<256x256xf32>
    %c0_8 = arith.constant 0 : index
    %c0_9 = arith.constant 0 : index
    %15 = vector.load %arg3[%c0_8, %c0_9] : memref<256x256xf32, #tpu.memory_space<vmem>>, vector<256x256xf32>
    %cst_10 = arith.constant dense<0.000000e+00> : vector<256x256xf32>
    %16 = tpu.matmul %15, %14, %cst_10 {dimension_numbers = #tpu.dot_dimension_numbers<[1], [0], [0], [1], [0, 0, 1, 1], [], []>} : vector<256x256xf32>, vector<256x256xf32>, vector<256x256xf32> -> vector<256x256xf32>
    %17 = arith.addf %16, %1 : vector<256x256xf32>
    %c0_11 = arith.constant 0 : index
    %c0_12 = arith.constant 0 : index
    %c0_13 = arith.constant 0 : index
    %18 = vector.load %arg4[%c0_11, %c0_12, %c0_13] : memref<1x256x256xf32, #tpu.memory_space<vmem>>, vector<1x256x256xf32>
    %19 = vector.shape_cast %18 : vector<1x256x256xf32> to vector<256x256xf32>
    %20 = vector.shape_cast %17 : vector<256x256xf32> to vector<1x256x256xf32>
    tpu.vector_store %arg4[%c0_11, %c0_12, %c0_13], %20 {strides = array<i32>} : memref<1x256x256xf32, #tpu.memory_space<vmem>>, vector<1x256x256xf32>,
    return
  }
  func.func @transform_0(%arg0: i32) -> (i32, i32, i32) {
    %c0_i32 = arith.constant 0 : i32
    %c0_i32_0 = arith.constant 0 : i32
    %c0_i32_1 = arith.constant 0 : i32
    return %arg0, %c0_i32, %c0_i32_0 : i32, i32, i32
  }
  func.func @transform_1(%arg0: i32) -> (i32, i32) {
    %c0_i32 = arith.constant 0 : i32
    %c0_i32_0 = arith.constant 0 : i32
    %c0_i32_1 = arith.constant 0 : i32
    return %c0_i32, %c0_i32_0 : i32, i32
  }
  func.func @transform_2(%arg0: i32) -> (i32, i32) {
    %c0_i32 = arith.constant 0 : i32
    %c0_i32_0 = arith.constant 0 : i32
    %c0_i32_1 = arith.constant 0 : i32
    return %c0_i32, %c0_i32_0 : i32, i32
  }
  func.func @transform_3(%arg0: i32) -> (i32, i32, i32) {
    %c0_i32 = arith.constant 0 : i32
    %c0_i32_0 = arith.constant 0 : i32
    %c0_i32_1 = arith.constant 0 : i32
    return %arg0, %c0_i32, %c0_i32_0 : i32, i32, i32
  }
}

</mosaic_0001>

<llo_original>
// kernel: tpu_custom_call.1
$region0: #{tpu_custom_call.1}
  #allocation0 [shape = 'u32[]', space=smem, size = 0x4, offset = 0x4, fixed_abs, tag = 'smem constant byte address 0x4 - core index']
  #allocation1 [shape = 'u32[144,128]{1,0:T(1,128)}', space=vmem, size = 0x12000, scoped, tag = 'internal scratch']
  %s0 = inlined_call_operand.hbm [shape: f32[2,256,256], index: 0, kind: input, shape index: {}]
  %s1 = inlined_call_operand.hbm [shape: f32[64,256], index: 1, kind: input, shape index: {}]
  %s2 = inlined_call_operand.hbm [shape: f32[256,256], index: 2, kind: input, shape index: {}]
  %s3 = inlined_call_operand.hbm [shape: f32[2,256,256], index: 3, kind: output, shape index: {}]
  %s4 = sld [smem:[#allocation0]]
  $region57: #{tpu_custom_call.1} parent=0
    _
  %s6 = ssub.s32 1, %s4
  %s7 = scalar_select 0, %s6, %s4
  $region1: #{tpu_custom_call.1} parent=0
    #allocation2 [shape = 'u8[524288]{0}', space=vmem, size = 0x80000, scoped, tag = 'input window, operand 0']
    #allocation3 [shape = 's32[2]{0}', space=sflag, size = 0x8, scoped, tag = 'scoped memory for tpu_custom_call.1']
    #allocation4 [shape = 's32[2]{0}', space=sflag, size = 0x8, scoped, tag = 'scoped memory for tpu_custom_call.1']
    #allocation5 [shape = 'u8[65536]{0}', space=vmem, size = 0x10000, scoped, tag = 'input window, operand 1, single buffered']
    #allocation6 [shape = 's32[1]{0}', space=sflag, size = 0x4, scoped, tag = 'scoped memory for tpu_custom_call.1']
    #allocation7 [shape = 'u8[262144]{0}', space=vmem, size = 0x40000, scoped, tag = 'input window, operand 2, single buffered']
    #allocation8 [shape = 'u8[524288]{0}', space=vmem, size = 0x80000, scoped, tag = 'output window, operand 0']
    %8 = vsyncpa [#allocation3], 0
    %s9 = scalar_lea.sflag [#allocation3], 1
    %10 = vsyncpa %s9, 0
    %11 = vsyncpa [#allocation6], 0
    %12 = vsyncpa [#allocation4], 0
    %s13 = scalar_lea.sflag [#allocation4], 1
    %14 = vsyncpa %s13, 0
    loop: start=0, step=1, limit=4
    $region2: #{tpu_custom_call.1} parent=1 // loop_pre_header
      _
    $region3: #{tpu_custom_call.1} parent=1 // loop_header
      %s16 = sphi 0, %s20
      %p17 = scmp.ge.s32.totalorder %s16, 4
      %s26 = sphi 0, %s28
      %s29 = sphi 0, %s26
      %s30 = sphi 0, %s29
      %s46 = sphi 0, %s30
      %s50 = sphi 0, %s50
      %s52 = sphi 0, %s50
      %s53 = sphi 0, %s52
      %s67 = sphi 0, %s53
      %s71 = sphi 0, %s71
      %s73 = sphi 0, %s71
      %s74 = sphi 0, %s73
      %s88 = sphi 0, %s74
      %s94 = sphi 0, %s96
      %s97 = sphi 0, %s94
      %s98 = sphi 0, %s97
      %s114 = sphi 0, %s98
    $region4: #{tpu_custom_call.1} parent=1 // loop_header_branch
      %19 = sbr.rel (%p17) target = $region8
    $region5: #{tpu_custom_call.1} parent=1 // loop_body
      %s21 = ssub.s32 %s16, 1
      %s22 = ssub.s32 %s16, 2
      %s23 = sadd.s32 %s16, 1
      %s24 = ssub.s32 %s16, %s23
      %p25 = scmp.eq.s32.totalorder %s24, 0
      %s27 = sadd.s32 %s26, 1
      %s28 = scalar_select %p25, %s26, %s27
      %p31 = pneg %p25
      %p32 = scmp.eq.s32.totalorder %s16, 1
      %p33 = por %p31, %p32
      %p34 = scmp.ne.s32.totalorder %s26, %s29
      %p35 = scmp.eq.s32.totalorder %s16, 0
      %p36 = por %p34, %p35
      %p37 = scmp.ne.s32.totalorder %s26, %s29
      %p38 = scmp.eq.s32.totalorder %s21, 1
      %p39 = por %p37, %p38
      %p40 = scmp.ne.s32.totalorder %s29, %s30
      %p41 = scmp.eq.s32.totalorder %s21, 0
      %p42 = por %p40, %p41
      %p43 = scmp.ne.s32.totalorder %s29, %s30
      %p44 = scmp.eq.s32.totalorder %s22, 1
      %p45 = por %p43, %p44
      %p47 = scmp.ne.s32.totalorder %s30, %s46
      %p48 = scmp.eq.s32.totalorder %s22, 0
      %p49 = por %p47, %p48
      %s51 = sadd.s32 %s50, 1
      %p54 = scmp.eq.s32.totalorder %s16, 1
      %p55 = scmp.ne.s32.totalorder %s50, %s52
      %p56 = scmp.eq.s32.totalorder %s16, 0
      %p57 = por %p55, %p56
      %p58 = scmp.ne.s32.totalorder %s50, %s52
      %p59 = scmp.eq.s32.totalorder %s21, 1
      %p60 = por %p58, %p59
      %p61 = scmp.ne.s32.totalorder %s52, %s53
      %p62 = scmp.eq.s32.totalorder %s21, 0
      %p63 = por %p61, %p62
      %p64 = scmp.ne.s32.totalorder %s52, %s53
      %p65 = scmp.eq.s32.totalorder %s22, 1
      %p66 = por %p64, %p65
      %p68 = scmp.ne.s32.totalorder %s53, %s67
      %p69 = scmp.eq.s32.totalorder %s22, 0
      %p70 = por %p68, %p69
      %s72 = sadd.s32 %s71, 1
      %p75 = scmp.eq.s32.totalorder %s16, 1
      %p76 = scmp.ne.s32.totalorder %s71, %s73
      %p77 = scmp.eq.s32.totalorder %s16, 0
      %p78 = por %p76, %p77
      %p79 = scmp.ne.s32.totalorder %s71, %s73
      %p80 = scmp.eq.s32.totalorder %s21, 1
      %p81 = por %p79, %p80
      %p82 = scmp.ne.s32.totalorder %s73, %s74
      %p83 = scmp.eq.s32.totalorder %s21, 0
      %p84 = por %p82, %p83
      %p85 = scmp.ne.s32.totalorder %s73, %s74
      %p86 = scmp.eq.s32.totalorder %s22, 1
      %p87 = por %p85, %p86
      %p89 = scmp.ne.s32.totalorder %s74, %s88
      %p90 = scmp.eq.s32.totalorder %s22, 0
      %p91 = por %p89, %p90
      %s92 = ssub.s32 %s16, %s23
      %p93 = scmp.eq.s32.totalorder %s92, 0
      %s95 = sadd.s32 %s94, 1
      %s96 = scalar_select %p93, %s94, %s95
      %p99 = pneg %p93
      %p100 = scmp.eq.s32.totalorder %s16, 1
      %p101 = por %p99, %p100
      %p102 = scmp.ne.s32.totalorder %s94, %s97
      %p103 = scmp.eq.s32.totalorder %s16, 0
      %p104 = por %p102, %p103
      %p105 = scmp.ne.s32.totalorder %s94, %s97
      %p106 = scmp.eq.s32.totalorder %s21, 1
      %p107 = por %p105, %p106
      %p108 = scmp.ne.s32.totalorder %s97, %s98
      %p109 = scmp.eq.s32.totalorder %s21, 0
      %p110 = por %p108, %p109
      %p111 = scmp.ne.s32.totalorder %s97, %s98
      %p112 = scmp.eq.s32.totalorder %s22, 1
      %p113 = por %p111, %p112
      %p115 = scmp.ne.s32.totalorder %s98, %s114
      %p116 = scmp.eq.s32.totalorder %s22, 0
      %p117 = por %p115, %p116
      %p118 = scmp.le.s32.totalorder 1, %s16
      %p119 = scmp.lt.s32.totalorder %s16, 3
      %p120 = pnand %p118, %p119
      %p121 = pneg %p120
      // Predicated region
      $region9: #{tpu_custom_call.1} parent=5 // pred_check
        _
      $region10: #{tpu_custom_call.1} parent=5 // pred_check_branch
        %123 = sbr.rel (%p120) target = $region12
      $region11: #{tpu_custom_call.1} parent=5 // pred_region
        %s124 = ssub.s32 %s16, 1
        // Predicated region
        $region13: #{tpu_custom_call.1} parent=11 // pred_check
          %p125 = pneg %p63
        $region14: #{tpu_custom_call.1} parent=11 // pred_check_branch
          %127 = sbr.rel (%p125) target = $region16
        $region15: #{tpu_custom_call.1} parent=11 // pred_region
          %s129 = ssub.s32 2048, 2048
          %130 = vsyncadd [#allocation6], %s129
          %s131 = sshll.u32 [#allocation5], 4
          %s132 = int_to_ptr.vmem [resolvable:$true] %s131
          %137 = dma.hbm_to_vmem [thread:$0]  %s1, 2048, %s132, [#allocation6], 256, 256, 16
        $region16: #{tpu_custom_call.1} parent=11 // pred_fallthru
          _
        // Predicated region
        $region17: #{tpu_custom_call.1} parent=11 // pred_check
          %p138 = pneg %p84
        $region18: #{tpu_custom_call.1} parent=11 // pred_check_branch
          %140 = sbr.rel (%p138) target = $region20
        $region19: #{tpu_custom_call.1} parent=11 // pred_region
          %s142 = ssub.s32 8192, 8192
          %143 = vsyncadd [#allocation6], %s142
          %s144 = sshll.u32 [#allocation7], 4
          %s145 = int_to_ptr.vmem [resolvable:$true] %s144
          %150 = dma.hbm_to_vmem [thread:$0]  %s2, 8192, %s145, [#allocation6], 256, 256, 16
        $region20: #{tpu_custom_call.1} parent=11 // pred_fallthru
          _
      $region12: #{tpu_custom_call.1} parent=5 // pred_fallthru
        _
      %p151 = scmp.lt.s32.totalorder %s16, 2
      // Predicated region
      $region21: #{tpu_custom_call.1} parent=5 // pred_check
        %p152 = pneg %p151
      $region22: #{tpu_custom_call.1} parent=5 // pred_check_branch
        %154 = sbr.rel (%p152) target = $region24
      $region23: #{tpu_custom_call.1} parent=5 // pred_region
        // Predicated region
        $region25: #{tpu_custom_call.1} parent=23 // pred_check
          %p155 = pneg %p36
        $region26: #{tpu_custom_call.1} parent=23 // pred_check_branch
          %157 = sbr.rel (%p155) target = $region28
        $region27: #{tpu_custom_call.1} parent=23 // pred_region
          %s158 = sand.u32 %s26, 1
          %s159 = scalar_lea.sflag [#allocation3], %s158
          %s160 = sand.u32 %s26, 1
          %s161 = smul.addr %s160, 512
          %s162 = scalar_lea.vmem [#allocation2], %s161
          %s164 = ssub.s32 8192, 8192
          %165 = vsyncadd %s159, %s164
          %s166 = smul.addr %s16, 64
          %s167 = smul.addr %s166, 128
          %s168 = scalar_lea.hbm %s0, %s167
          %s169 = sshll.u32 %s162, 4
          %s170 = int_to_ptr.vmem [resolvable:$true] %s169
          %175 = dma.hbm_to_vmem [thread:$0]  %s168, 8192, %s170, %s159, 256, 256, 16
        $region28: #{tpu_custom_call.1} parent=23 // pred_fallthru
          _
      $region24: #{tpu_custom_call.1} parent=5 // pred_fallthru
        _
      %p176 = scmp.le.s32.totalorder 1, %s16
      %p177 = scmp.lt.s32.totalorder %s16, 3
      %p178 = pnand %p176, %p177
      %p179 = pneg %p178
      // Predicated region
      $region29: #{tpu_custom_call.1} parent=5 // pred_check
        _
      $region30: #{tpu_custom_call.1} parent=5 // pred_check_branch
        %181 = sbr.rel (%p178) target = $region32
      $region31: #{tpu_custom_call.1} parent=5 // pred_region
        %s182 = ssub.s32 %s16, 1
        %s183 = sand.u32 %s29, 1
        %s184 = scalar_lea.sflag [#allocation3], %s183
        %s185 = sand.u32 %s29, 1
        %s186 = smul.addr %s185, 512
        %s187 = scalar_lea.vmem [#allocation2], %s186
        // Predicated region
        $region33: #{tpu_custom_call.1} parent=31 // pred_check
          %p188 = pneg %p42
        $region34: #{tpu_custom_call.1} parent=31 // pred_check_branch
          %190 = sbr.rel (%p188) target = $region36
        $region35: #{tpu_custom_call.1} parent=31 // pred_region
          %191 = dma.done %s184, 8192
        $region36: #{tpu_custom_call.1} parent=31 // pred_fallthru
          _
        // Predicated region
        $region37: #{tpu_custom_call.1} parent=31 // pred_check
          %p192 = pneg %p63
        $region38: #{tpu_custom_call.1} parent=31 // pred_check_branch
          %194 = sbr.rel (%p192) target = $region40
        $region39: #{tpu_custom_call.1} parent=31 // pred_region
          %195 = dma.done [#allocation6], 2048
        $region40: #{tpu_custom_call.1} parent=31 // pred_fallthru
          _
        // Predicated region
        $region41: #{tpu_custom_call.1} parent=31 // pred_check
          %p196 = pneg %p84
        $region42: #{tpu_custom_call.1} parent=31 // pred_check_branch
          %198 = sbr.rel (%p196) target = $region44
        $region43: #{tpu_custom_call.1} parent=31 // pred_region
          %199 = dma.done [#allocation6], 8192
        $region44: #{tpu_custom_call.1} parent=31 // pred_fallthru
          _
        %s200 = sand.u32 %s29, 1
        %s201 = scalar_lea.sflag [#allocation3], %s200
        %s202 = sand.u32 %s29, 1
        %s203 = smul.addr %s202, 512
        %s204 = scalar_lea.vmem [#allocation2], %s203
        %p205 = pneg %p42
        %p206 = pneg %p39
        %p207 = pneg %p63
        %p208 = pneg %p60
        %p209 = pneg %p84
        %p210 = pneg %p81
        %p211 = pneg %p110
        %p212 = pneg %p107
        %s213 = sand.u32 %s97, 1
        %s214 = scalar_lea.sflag [#allocation4], %s213
        %s215 = sand.u32 %s97, 1
        %s216 = smul.addr %s215, 512
        %s217 = scalar_lea.vmem [#allocation8], %s216
        %v218 = vld [vmem:[%s187] sm:$0xff]
        %v219 = vld [vmem:[%s187 + $0x8] sm:$0xff]
        %v220 = vld [vmem:[%s187 + $0x10] sm:$0xff]
        %v221 = vld [vmem:[%s187 + $0x18] sm:$0xff]
        %v222 = vld [vmem:[%s187 + $0x20] sm:$0xff]
        %v223 = vld [vmem:[%s187 + $0x28] sm:$0xff]
        %v224 = vld [vmem:[%s187 + $0x30] sm:$0xff]
        %v225 = vld [vmem:[%s187 + $0x38] sm:$0xff]
        %v226 = vld [vmem:[%s187 + $0x40] sm:$0xff]
        %v227 = vld [vmem:[%s187 + $0x48] sm:$0xff]
        %v228 = vld [vmem:[%s187 + $0x50] sm:$0xff]
        %v229 = vld [vmem:[%s187 + $0x58] sm:$0xff]
        %v230 = vld [vmem:[%s187 + $0x60] sm:$0xff]
        %v231 = vld [vmem:[%s187 + $0x68] sm:$0xff]
        %v232 = vld [vmem:[%s187 + $0x70] sm:$0xff]
        %v233 = vld [vmem:[%s187 + $0x78] sm:$0xff]
        %v234 = vld [vmem:[%s187 + $0x80] sm:$0xff]
        %v235 = vld [vmem:[%s187 + $0x88] sm:$0xff]
        %v236 = vld [vmem:[%s187 + $0x90] sm:$0xff]
        %v237 = vld [vmem:[%s187 + $0x98] sm:$0xff]
        %v238 = vld [vmem:[%s187 + $0xa0] sm:$0xff]
        %v239 = vld [vmem:[%s187 + $0xa8] sm:$0xff]
        %v240 = vld [vmem:[%s187 + $0xb0] sm:$0xff]
        %v241 = vld [vmem:[%s187 + $0xb8] sm:$0xff]
        %v242 = vld [vmem:[%s187 + $0xc0] sm:$0xff]
        %v243 = vld [vmem:[%s187 + $0xc8] sm:$0xff]
        %v244 = vld [vmem:[%s187 + $0xd0] sm:$0xff]
        %v245 = vld [vmem:[%s187 + $0xd8] sm:$0xff]
        %v246 = vld [vmem:[%s187 + $0xe0] sm:$0xff]
        %v247 = vld [vmem:[%s187 + $0xe8] sm:$0xff]
        %v248 = vld [vmem:[%s187 + $0xf0] sm:$0xff]
        %v249 = vld [vmem:[%s187 + $0xf8] sm:$0xff]
        %v250 = vld [vmem:[%s187 + $0x100] sm:$0xff]
        %v251 = vld [vmem:[%s187 + $0x108] sm:$0xff]
        %v252 = vld [vmem:[%s187 + $0x110] sm:$0xff]
        %v253 = vld [vmem:[%s187 + $0x118] sm:$0xff]
        %v254 = vld [vmem:[%s187 + $0x120] sm:$0xff]
        %v255 = vld [vmem:[%s187 + $0x128] sm:$0xff]
        %v256 = vld [vmem:[%s187 + $0x130] sm:$0xff]
        %v257 = vld [vmem:[%s187 + $0x138] sm:$0xff]
        %v258 = vld [vmem:[%s187 + $0x140] sm:$0xff]
        %v259 = vld [vmem:[%s187 + $0x148] sm:$0xff]
        %v260 = vld [vmem:[%s187 + $0x150] sm:$0xff]
        %v261 = vld [vmem:[%s187 + $0x158] sm:$0xff]
        %v262 = vld [vmem:[%s187 + $0x160] sm:$0xff]
        %v263 = vld [vmem:[%s187 + $0x168] sm:$0xff]
        %v264 = vld [vmem:[%s187 + $0x170] sm:$0xff]
        %v265 = vld [vmem:[%s187 + $0x178] sm:$0xff]
        %v266 = vld [vmem:[%s187 + $0x180] sm:$0xff]
        %v267 = vld [vmem:[%s187 + $0x188] sm:$0xff]
        %v268 = vld [vmem:[%s187 + $0x190] sm:$0xff]
        %v269 = vld [vmem:[%s187 + $0x198] sm:$0xff]
        %v270 = vld [vmem:[%s187 + $0x1a0] sm:$0xff]
        %v271 = vld [vmem:[%s187 + $0x1a8] sm:$0xff]
        %v272 = vld [vmem:[%s187 + $0x1b0] sm:$0xff]
        %v273 = vld [vmem:[%s187 + $0x1b8] sm:$0xff]
        %v274 = vld [vmem:[%s187 + $0x1c0] sm:$0xff]
        %v275 = vld [vmem:[%s187 + $0x1c8] sm:$0xff]
        %v276 = vld [vmem:[%s187 + $0x1d0] sm:$0xff]
        %v277 = vld [vmem:[%s187 + $0x1d8] sm:$0xff]
        %v278 = vld [vmem:[%s187 + $0x1e0] sm:$0xff]
        %v279 = vld [vmem:[%s187 + $0x1e8] sm:$0xff]
        %v280 = vld [vmem:[%s187 + $0x1f0] sm:$0xff]
        %v281 = vld [vmem:[%s187 + $0x1f8] sm:$0xff]
        %v282 = vld [vmem:[#allocation5] sm:$0xff]
        %v283 = vld [vmem:[#allocation5 + $0x8] sm:$0xff]
        %v284 = vld [vmem:[#allocation5 + $0x10] sm:$0xff]
        %v285 = vld [vmem:[#allocation5 + $0x18] sm:$0xff]
        %v286 = vld [vmem:[#allocation5 + $0x20] sm:$0xff]
        %v287 = vld [vmem:[#allocation5 + $0x28] sm:$0xff]
        %v288 = vld [vmem:[#allocation5 + $0x30] sm:$0xff]
        %v289 = vld [vmem:[#allocation5 + $0x38] sm:$0xff]
        %v290 = vld [vmem:[#allocation5 + $0x40] sm:$0xff]
        %v291 = vld [vmem:[#allocation5 + $0x48] sm:$0xff]
        %v292 = vld [vmem:[#allocation5 + $0x50] sm:$0xff]
        %v293 = vld [vmem:[#allocation5 + $0x58] sm:$0xff]
        %v294 = vld [vmem:[#allocation5 + $0x60] sm:$0xff]
        %v295 = vld [vmem:[#allocation5 + $0x68] sm:$0xff]
        %v296 = vld [vmem:[#allocation5 + $0x70] sm:$0xff]
        %v297 = vld [vmem:[#allocation5 + $0x78] sm:$0xff]
        %298 = vmatprep.subr.mxu0 %v249
        %299 = vmatpush1.msra.mxu0 %v248
        %300 = vmatprep.subr.mxu0 %v247
        %301 = vmatpush1.msra.mxu0 %v246
        %302 = vmatprep.subr.mxu0 %v245
        %303 = vmatpush1.msra.mxu0 %v244
        %304 = vmatprep.subr.mxu0 %v243
        %305 = vmatpush1.msra.mxu0 %v242
        %306 = vmatprep.subr.mxu0 %v241
        %307 = vmatpush1.msra.mxu0 %v240
        %308 = vmatprep.subr.mxu0 %v239
        %309 = vmatpush1.msra.mxu0 %v238
        %310 = vmatprep.subr.mxu0 %v237
        %311 = vmatpush1.msra.mxu0 %v236
        %312 = vmatprep.subr.mxu0 %v235
        %313 = vmatpush1.msra.mxu0 %v234
        %314 = vmatprep.subr.mxu0 %v233
        %315 = vmatpush1.msra.mxu0 %v232
        %316 = vmatprep.subr.mxu0 %v231
        %317 = vmatpush1.msra.mxu0 %v230
        %318 = vmatprep.subr.mxu0 %v229
        %319 = vmatpush1.msra.mxu0 %v228
        %320 = vmatprep.subr.mxu0 %v227
        %321 = vmatpush1.msra.mxu0 %v226
        %322 = vmatprep.subr.mxu0 %v225
        %323 = vmatpush1.msra.mxu0 %v224
        %324 = vmatprep.subr.mxu0 %v223
        %325 = vmatpush1.msra.mxu0 %v222
        %326 = vmatprep.subr.mxu0 %v221
        %327 = vmatpush1.msra.mxu0 %v220
        %328 = vmatprep.subr.mxu0 %v219
        %329 = vmatpush1.msra.mxu0 %v218
        %330 = vmatprep.subr.mxu0 %v281
        %331 = vmatpush2.msra.mxu0 %v280
        %332 = vmatprep.subr.mxu0 %v279
        %333 = vmatpush2.msra.mxu0 %v278
        %334 = vmatprep.subr.mxu0 %v277
        %335 = vmatpush2.msra.mxu0 %v276
        %336 = vmatprep.subr.mxu0 %v275
        %337 = vmatpush2.msra.mxu0 %v274
        %338 = vmatprep.subr.mxu0 %v273
        %339 = vmatpush2.msra.mxu0 %v272
        %340 = vmatprep.subr.mxu0 %v271
        %341 = vmatpush2.msra.mxu0 %v270
        %342 = vmatprep.subr.mxu0 %v269
        %343 = vmatpush2.msra.mxu0 %v268
        %344 = vmatprep.subr.mxu0 %v267
        %345 = vmatpush2.msra.mxu0 %v266
        %346 = vmatprep.subr.mxu0 %v265
        %347 = vmatpush2.msra.mxu0 %v264
        %348 = vmatprep.subr.mxu0 %v263
        %349 = vmatpush2.msra.mxu0 %v262
        %350 = vmatprep.subr.mxu0 %v261
        %351 = vmatpush2.msra.mxu0 %v260
        %352 = vmatprep.subr.mxu0 %v259
        %353 = vmatpush2.msra.mxu0 %v258
        %354 = vmatprep.subr.mxu0 %v257
        %355 = vmatpush2.msra.mxu0 %v256
        %356 = vmatprep.subr.mxu0 %v255
        %357 = vmatpush2.msra.mxu0 %v254
        %358 = vmatprep.subr.mxu0 %v253
        %359 = vmatpush2.msra.mxu0 %v252
        %360 = vmatprep.subr.mxu0 %v251
        %361 = vmatpush2.msra.mxu0 %v250
        %362 = vmatprep.mubr.f32.mxu0 %v283
        %363 = vmatmul.mubr.f32.gmra.mxu0 %v282
        %v364 = vpop.f32.mrf.mxu0
        %v365 = vadd.f32 0.0, %v364
        %v366 = vpop.f32.mrf.mxu0
        %v367 = vadd.f32 0.0, %v366
        %368 = vmatprep.mubr.f32.mxu0 %v285
        %369 = vmatmul.mubr.f32.gmra.mxu0 %v284
        %v370 = vpop.f32.mrf.mxu0
        %v371 = vadd.f32 0.0, %v370
        %v372 = vpop.f32.mrf.mxu0
        %v373 = vadd.f32 0.0, %v372
        %374 = vmatprep.mubr.f32.mxu0 %v287
        %375 = vmatmul.mubr.f32.gmra.mxu0 %v286
        %v376 = vpop.f32.mrf.mxu0
        %v377 = vadd.f32 0.0, %v376
        %v378 = vpop.f32.mrf.mxu0
        %v379 = vadd.f32 0.0, %v378
        %380 = vmatprep.mubr.f32.mxu0 %v289
        %381 = vmatmul.mubr.f32.gmra.mxu0 %v288
        %v382 = vpop.f32.mrf.mxu0
        %v383 = vadd.f32 0.0, %v382
        %v384 = vpop.f32.mrf.mxu0
        %v385 = vadd.f32 0.0, %v384
        %386 = vmatprep.mubr.f32.mxu0 %v291
        %387 = vmatmul.mubr.f32.gmra.mxu0 %v290
        %v388 = vpop.f32.mrf.mxu0
        %v389 = vadd.f32 0.0, %v388
        %v390 = vpop.f32.mrf.mxu0
        %v391 = vadd.f32 0.0, %v390
        %392 = vmatprep.mubr.f32.mxu0 %v293
        %393 = vmatmul.mubr.f32.gmra.mxu0 %v292
        %v394 = vpop.f32.mrf.mxu0
        %v395 = vadd.f32 0.0, %v394
        %v396 = vpop.f32.mrf.mxu0
        %v397 = vadd.f32 0.0, %v396
        %398 = vmatprep.mubr.f32.mxu0 %v295
        %399 = vmatmul.mubr.f32.gmra.mxu0 %v294
        %v400 = vpop.f32.mrf.mxu0
        %v401 = vadd.f32 0.0, %v400
        %v402 = vpop.f32.mrf.mxu0
        %v403 = vadd.f32 0.0, %v402
        %404 = vmatprep.mubr.f32.mxu0 %v297
        %405 = vmatmul.mubr.f32.gmra.mxu0 %v296
        %v406 = vpop.f32.mrf.mxu0
        %v407 = vadd.f32 0.0, %v406
        %v408 = vpop.f32.mrf.mxu0
        %v409 = vadd.f32 0.0, %v408
        %410 = vdwg.mxu0
        %411 = vmatprep.subr.mxu0 %v249
        %412 = vmatpush1.xpose.msra.mxu0 %v248
        %413 = vmatprep.subr.mxu0 %v247
        %414 = vmatpush1.xpose.msra.mxu0 %v246
        %415 = vmatprep.subr.mxu0 %v245
        %416 = vmatpush1.xpose.msra.mxu0 %v244
        %417 = vmatprep.subr.mxu0 %v243
        %418 = vmatpush1.xpose.msra.mxu0 %v242
        %419 = vmatprep.subr.mxu0 %v241
        %420 = vmatpush1.xpose.msra.mxu0 %v240
        %421 = vmatprep.subr.mxu0 %v239
        %422 = vmatpush1.xpose.msra.mxu0 %v238
        %423 = vmatprep.subr.mxu0 %v237
        %424 = vmatpush1.xpose.msra.mxu0 %v236
        %425 = vmatprep.subr.mxu0 %v235
        %426 = vmatpush1.xpose.msra.mxu0 %v234
        %427 = vmatprep.subr.mxu0 %v233
        %428 = vmatpush1.xpose.msra.mxu0 %v232
        %429 = vmatprep.subr.mxu0 %v231
        %430 = vmatpush1.xpose.msra.mxu0 %v230
        %431 = vmatprep.subr.mxu0 %v229
        %432 = vmatpush1.xpose.msra.mxu0 %v228
        %433 = vmatprep.subr.mxu0 %v227
        %434 = vmatpush1.xpose.msra.mxu0 %v226
        %435 = vmatprep.subr.mxu0 %v225
        %436 = vmatpush1.xpose.msra.mxu0 %v224
        %437 = vmatprep.subr.mxu0 %v223
        %438 = vmatpush1.xpose.msra.mxu0 %v222
        %439 = vmatprep.subr.mxu0 %v221
        %440 = vmatpush1.xpose.msra.mxu0 %v220
        %441 = vmatprep.subr.mxu0 %v219
        %442 = vmatpush1.xpose.msra.mxu0 %v218
        %443 = vmatprep.subr.mxu0 %v281
        %444 = vmatpush2.xpose.msra.mxu0 %v280
        %445 = vmatprep.subr.mxu0 %v279
        %446 = vmatpush2.xpose.msra.mxu0 %v278
        %447 = vmatprep.subr.mxu0 %v277
        %448 = vmatpush2.xpose.msra.mxu0 %v276
        %449 = vmatprep.subr.mxu0 %v275
        %450 = vmatpush2.xpose.msra.mxu0 %v274
        %451 = vmatprep.subr.mxu0 %v273
        %452 = vmatpush2.xpose.msra.mxu0 %v272
        %453 = vmatprep.subr.mxu0 %v271
        %454 = vmatpush2.xpose.msra.mxu0 %v270
        %455 = vmatprep.subr.mxu0 %v269
        %456 = vmatpush2.xpose.msra.mxu0 %v268
        %457 = vmatprep.subr.mxu0 %v267
        %458 = vmatpush2.xpose.msra.mxu0 %v266
        %459 = vmatprep.subr.mxu0 %v265
        %460 = vmatpush2.xpose.msra.mxu0 %v264
        %461 = vmatprep.subr.mxu0 %v263
        %462 = vmatpush2.xpose.msra.mxu0 %v262
        %463 = vmatprep.subr.mxu0 %v261
        %464 = vmatpush2.xpose.msra.mxu0 %v260
        %465 = vmatprep.subr.mxu0 %v259
        %466 = vmatpush2.xpose.msra.mxu0 %v258
        %467 = vmatprep.subr.mxu0 %v257
        %468 = vmatpush2.xpose.msra.mxu0 %v256
        %469 = vmatprep.subr.mxu0 %v255
        %470 = vmatpush2.xpose.msra.mxu0 %v254
        %471 = vmatprep.subr.mxu0 %v253
        %472 = vmatpush2.xpose.msra.mxu0 %v252
        %473 = vmatprep.subr.mxu0 %v251
        %474 = vmatpush2.xpose.msra.mxu0 %v250
        %475 = vmatprep.mubr.f32.mxu0 %v367
        %476 = vmatmul.mubr.f32.gmra.mxu0 %v365
        %v477 = vpop.f32.mrf.mxu0
        %v478 = vadd.f32 0.0, %v477
        %v479 = vpop.f32.mrf.mxu0
        %v480 = vadd.f32 0.0, %v479
        %481 = vmatprep.mubr.f32.mxu0 %v373
        %482 = vmatmul.mubr.f32.gmra.mxu0 %v371
        %v483 = vpop.f32.mrf.mxu0
        %v484 = vadd.f32 0.0, %v483
        %v485 = vpop.f32.mrf.mxu0
        %v486 = vadd.f32 0.0, %v485
        %487 = vmatprep.mubr.f32.mxu0 %v379
        %488 = vmatmul.mubr.f32.gmra.mxu0 %v377
        %v489 = vpop.f32.mrf.mxu0
        %v490 = vadd.f32 0.0, %v489
        %v491 = vpop.f32.mrf.mxu0
        %v492 = vadd.f32 0.0, %v491
        %493 = vmatprep.mubr.f32.mxu0 %v385
        %494 = vmatmul.mubr.f32.gmra.mxu0 %v383
        %v495 = vpop.f32.mrf.mxu0
        %v496 = vadd.f32 0.0, %v495
        %v497 = vpop.f32.mrf.mxu0
        %v498 = vadd.f32 0.0, %v497
        %499 = vmatprep.mubr.f32.mxu0 %v391
        %500 = vmatmul.mubr.f32.gmra.mxu0 %v389
        %v501 = vpop.f32.mrf.mxu0
        %v502 = vadd.f32 0.0, %v501
        %v503 = vpop.f32.mrf.mxu0
        %v504 = vadd.f32 0.0, %v503
        %505 = vmatprep.mubr.f32.mxu0 %v397
        %506 = vmatmul.mubr.f32.gmra.mxu0 %v395
        %v507 = vpop.f32.mrf.mxu0
        %v508 = vadd.f32 0.0, %v507
        %v509 = vpop.f32.mrf.mxu0
        %v510 = vadd.f32 0.0, %v509
        %511 = vmatprep.mubr.f32.mxu0 %v403
        %512 = vmatmul.mubr.f32.gmra.mxu0 %v401
        %v513 = vpop.f32.mrf.mxu0
        %v514 = vadd.f32 0.0, %v513
        %v515 = vpop.f32.mrf.mxu0
        %v516 = vadd.f32 0.0, %v515
        %517 = vmatprep.mubr.f32.mxu0 %v409
        %518 = vmatmul.mubr.f32.gmra.mxu0 %v407
        %v519 = vpop.f32.mrf.mxu0
        %v520 = vadd.f32 0.0, %v519
        %v521 = vpop.f32.mrf.mxu0
        %v522 = vadd.f32 0.0, %v521
        %523 = vdwg.mxu0
        %v524 = vmax.f32 %v478, %v480
        %525 = vmax.xlane.f32.xlu0 %v524
        %v526 = vpop.xlane.xlu0 %525
        %v527 = vmax.f32 %v484, %v486
        %528 = vmax.xlane.f32.xlu0 %v527
        %v529 = vpop.xlane.xlu0 %528
        %v530 = vmax.f32 %v490, %v492
        %531 = vmax.xlane.f32.xlu0 %v530
        %v532 = vpop.xlane.xlu0 %531
        %v533 = vmax.f32 %v496, %v498
        %534 = vmax.xlane.f32.xlu0 %v533
        %v535 = vpop.xlane.xlu0 %534
        %v536 = vmax.f32 %v502, %v504
        %537 = vmax.xlane.f32.xlu0 %v536
        %v538 = vpop.xlane.xlu0 %537
        %v539 = vmax.f32 %v508, %v510
        %540 = vmax.xlane.f32.xlu0 %v539
        %v541 = vpop.xlane.xlu0 %540
        %v542 = vmax.f32 %v514, %v516
        %543 = vmax.xlane.f32.xlu0 %v542
        %v544 = vpop.xlane.xlu0 %543
        %v545 = vmax.f32 %v520, %v522
        %546 = vmax.xlane.f32.xlu0 %v545
        %v547 = vpop.xlane.xlu0 %546
        %v548 = vsub.f32 %v478, %v526
        %v549 = vsub.f32 %v480, %v526
        %v550 = vsub.f32 %v484, %v529
        %v551 = vsub.f32 %v486, %v529
        %v552 = vsub.f32 %v490, %v532
        %v553 = vsub.f32 %v492, %v532
        %v554 = vsub.f32 %v496, %v535
        %v555 = vsub.f32 %v498, %v535
        %v556 = vsub.f32 %v502, %v538
        %v557 = vsub.f32 %v504, %v538
        %v558 = vsub.f32 %v508, %v541
        %v559 = vsub.f32 %v510, %v541
        %v560 = vsub.f32 %v514, %v544
        %v561 = vsub.f32 %v516, %v544
        %v562 = vsub.f32 %v520, %v547
        %v563 = vsub.f32 %v522, %v547
        %v564 = vmul.f32 %v548, 1.442695
        %v565 = vpow.pop %v564
        %v566 = vmul.f32 %v549, 1.442695
        %v567 = vpow.pop %v566
        %v568 = vmul.f32 %v550, 1.442695
        %v569 = vpow.pop %v568
        %v570 = vmul.f32 %v551, 1.442695
        %v571 = vpow.pop %v570
        %v572 = vmul.f32 %v552, 1.442695
        %v573 = vpow.pop %v572
        %v574 = vmul.f32 %v553, 1.442695
        %v575 = vpow.pop %v574
        %v576 = vmul.f32 %v554, 1.442695
        %v577 = vpow.pop %v576
        %v578 = vmul.f32 %v555, 1.442695
        %v579 = vpow.pop %v578
        %v580 = vmul.f32 %v556, 1.442695
        %v581 = vpow.pop %v580
        %v582 = vmul.f32 %v557, 1.442695
        %v583 = vpow.pop %v582
        %v584 = vmul.f32 %v558, 1.442695
        %v585 = vpow.pop %v584
        %v586 = vmul.f32 %v559, 1.442695
        %v587 = vpow.pop %v586
        %v588 = vmul.f32 %v560, 1.442695
        %v589 = vpow.pop %v588
        %v590 = vmul.f32 %v561, 1.442695
        %v591 = vpow.pop %v590
        %v592 = vmul.f32 %v562, 1.442695
        %v593 = vpow.pop %v592
        %v594 = vmul.f32 %v563, 1.442695
        %v595 = vpow.pop %v594
        %v596 = vadd.f32 %v565, %v567
        %597 = vadd.xlane.f32.xlu0 %v596
        %v598 = vpop.xlane.xlu0 %597
        %v599 = vadd.f32 %v569, %v571
        %600 = vadd.xlane.f32.xlu0 %v599
        %v601 = vpop.xlane.xlu0 %600
        %v602 = vadd.f32 %v573, %v575
        %603 = vadd.xlane.f32.xlu0 %v602
        %v604 = vpop.xlane.xlu0 %603
        %v605 = vadd.f32 %v577, %v579
        %606 = vadd.xlane.f32.xlu0 %v605
        %v607 = vpop.xlane.xlu0 %606
        %v608 = vadd.f32 %v581, %v583
        %609 = vadd.xlane.f32.xlu0 %v608
        %v610 = vpop.xlane.xlu0 %609
        %v611 = vadd.f32 %v585, %v587
        %612 = vadd.xlane.f32.xlu0 %v611
        %v613 = vpop.xlane.xlu0 %612
        %v614 = vadd.f32 %v589, %v591
        %615 = vadd.xlane.f32.xlu0 %v614
        %v616 = vpop.xlane.xlu0 %615
        %v617 = vadd.f32 %v593, %v595
        %618 = vadd.xlane.f32.xlu0 %v617
        %v619 = vpop.xlane.xlu0 %618
        %v620 = vrcp.pop %v598
        %v621 = vmul.f32 %v565, %v620
        %v622 = vmul.f32 %v567, %v620
        %v623 = vrcp.pop %v601
        %v624 = vmul.f32 %v569, %v623
        %v625 = vmul.f32 %v571, %v623
        %v626 = vrcp.pop %v604
        %v627 = vmul.f32 %v573, %v626
        %v628 = vmul.f32 %v575, %v626
        %v629 = vrcp.pop %v607
        %v630 = vmul.f32 %v577, %v629
        %v631 = vmul.f32 %v579, %v629
        %v632 = vrcp.pop %v610
        %v633 = vmul.f32 %v581, %v632
        %v634 = vmul.f32 %v583, %v632
        %v635 = vrcp.pop %v613
        %v636 = vmul.f32 %v585, %v635
        %v637 = vmul.f32 %v587, %v635
        %v638 = vrcp.pop %v616
        %v639 = vmul.f32 %v589, %v638
        %v640 = vmul.f32 %v591, %v638
        %v641 = vrcp.pop %v619
        %v642 = vmul.f32 %v593, %v641
        %v643 = vmul.f32 %v595, %v641
        %644 = vxpose.xlu0.b32.start [1/16] %v621, 128
        %645 = vxpose.xlu0.b32.cont [2/16] %v624, 128
        %646 = vxpose.xlu0.b32.cont [3/16] %v627, 128
        %647 = vxpose.xlu0.b32.cont [4/16] %v630, 128
        %648 = vxpose.xlu0.b32.cont [5/16] %v633, 128
        %649 = vxpose.xlu0.b32.cont [6/16] %v636, 128
        %650 = vxpose.xlu0.b32.cont [7/16] %v639, 128
        %651 = vxpose.xlu0.b32.cont [8/16] %v642, 128
        %652 = vxpose.xlu0.b32.cont [9/16] 0.0, 128
        %653 = vxpose.xlu0.b32.cont [10/16] 0.0, 128
        %654 = vxpose.xlu0.b32.cont [11/16] 0.0, 128
        %655 = vxpose.xlu0.b32.cont [12/16] 0.0, 128
        %656 = vxpose.xlu0.b32.cont [13/16] 0.0, 128
        %657 = vxpose.xlu0.b32.cont [14/16] 0.0, 128
        %658 = vxpose.xlu0.b32.cont [15/16] 0.0, 128
        %659 = vxpose.xlu0.b32.end [16/16] 0.0, 128
        %v660 = vpop.trf.xlu0
        %v661 = vpop.trf.xlu0
        %v662 = vpop.trf.xlu0
        %v663 = vpop.trf.xlu0
        %v664 = vpop.trf.xlu0
        %v665 = vpop.trf.xlu0
        %v666 = vpop.trf.xlu0
        %v667 = vpop.trf.xlu0
        %v668 = vpop.trf.xlu0
        %v669 = vpop.trf.xlu0
        %v670 = vpop.trf.xlu0
        %v671 = vpop.trf.xlu0
        %v672 = vpop.trf.xlu0
        %v673 = vpop.trf.xlu0
        %v674 = vpop.trf.xlu0
        %v675 = vpop.trf.xlu0
        %676 = vxpose.xlu0.b32.start [1/16] %v622, 128
        %677 = vxpose.xlu0.b32.cont [2/16] %v625, 128
        %678 = vxpose.xlu0.b32.cont [3/16] %v628, 128
        %679 = vxpose.xlu0.b32.cont [4/16] %v631, 128
        %680 = vxpose.xlu0.b32.cont [5/16] %v634, 128
        %681 = vxpose.xlu0.b32.cont [6/16] %v637, 128
        %682 = vxpose.xlu0.b32.cont [7/16] %v640, 128
        %683 = vxpose.xlu0.b32.cont [8/16] %v643, 128
        %684 = vxpose.xlu0.b32.cont [9/16] 0.0, 128
        %685 = vxpose.xlu0.b32.cont [10/16] 0.0, 128
        %686 = vxpose.xlu0.b32.cont [11/16] 0.0, 128
        %687 = vxpose.xlu0.b32.cont [12/16] 0.0, 128
        %688 = vxpose.xlu0.b32.cont [13/16] 0.0, 128
        %689 = vxpose.xlu0.b32.cont [14/16] 0.0, 128
        %690 = vxpose.xlu0.b32.cont [15/16] 0.0, 128
        %691 = vxpose.xlu0.b32.end [16/16] 0.0, 128
        %v692 = vpop.trf.xlu0
        %v693 = vpop.trf.xlu0
        %v694 = vpop.trf.xlu0
        %v695 = vpop.trf.xlu0
        %v696 = vpop.trf.xlu0
        %v697 = vpop.trf.xlu0
        %v698 = vpop.trf.xlu0
        %v699 = vpop.trf.xlu0
        %v700 = vpop.trf.xlu0
        %v701 = vpop.trf.xlu0
        %v702 = vpop.trf.xlu0
        %v703 = vpop.trf.xlu0
        %v704 = vpop.trf.xlu0
        %v705 = vpop.trf.xlu0
        %v706 = vpop.trf.xlu0
        %v707 = vpop.trf.xlu0
        %vm708 = vcmask 523264
        %v710 = vsel %vm708, %v660, 0
        %v713 = vsel %vm708, %v661, 0
        %v716 = vsel %vm708, %v662, 0
        %v719 = vsel %vm708, %v663, 0
        %v722 = vsel %vm708, %v664, 0
        %v725 = vsel %vm708, %v665, 0
        %v728 = vsel %vm708, %v666, 0
        %v731 = vsel %vm708, %v667, 0
        %v734 = vsel %vm708, %v668, 0
        %v737 = vsel %vm708, %v669, 0
        %v740 = vsel %vm708, %v670, 0
        %v743 = vsel %vm708, %v671, 0
        %v746 = vsel %vm708, %v672, 0
        %v749 = vsel %vm708, %v673, 0
        %v752 = vsel %vm708, %v674, 0
        %v755 = vsel %vm708, %v675, 0
        %v758 = vsel %vm708, %v692, 0
        %v761 = vsel %vm708, %v693, 0
        %v764 = vsel %vm708, %v694, 0
        %v767 = vsel %vm708, %v695, 0
        %v770 = vsel %vm708, %v696, 0
        %v773 = vsel %vm708, %v697, 0
        %v776 = vsel %vm708, %v698, 0
        %v779 = vsel %vm708, %v699, 0
        %v782 = vsel %vm708, %v700, 0
        %v785 = vsel %vm708, %v701, 0
        %v788 = vsel %vm708, %v702, 0
        %v791 = vsel %vm708, %v703, 0
        %v794 = vsel %vm708, %v704, 0
        %v797 = vsel %vm708, %v705, 0
        %v800 = vsel %vm708, %v706, 0
        %v803 = vsel %vm708, %v707, 0
        %805 = vmatprep.subr.mxu0 0.0
        %806 = vmatpush1.msra.mxu0 0.0
        %807 = vmatprep.subr.mxu0 0.0
        %808 = vmatpush1.msra.mxu0 0.0
        %809 = vmatprep.subr.mxu0 0.0
        %810 = vmatpush1.msra.mxu0 0.0
        %811 = vmatprep.subr.mxu0 0.0
        %812 = vmatpush1.msra.mxu0 0.0
        %813 = vmatprep.subr.mxu0 0.0
        %814 = vmatpush1.msra.mxu0 0.0
        %815 = vmatprep.subr.mxu0 0.0
        %816 = vmatpush1.msra.mxu0 0.0
        %817 = vmatprep.subr.mxu0 0.0
        %818 = vmatpush1.msra.mxu0 0.0
        %819 = vmatprep.subr.mxu0 0.0
        %820 = vmatpush1.msra.mxu0 0.0
        %821 = vmatprep.subr.mxu0 %v409
        %822 = vmatpush1.msra.mxu0 %v407
        %823 = vmatprep.subr.mxu0 %v403
        %824 = vmatpush1.msra.mxu0 %v401
        %825 = vmatprep.subr.mxu0 %v397
        %826 = vmatpush1.msra.mxu0 %v395
        %827 = vmatprep.subr.mxu0 %v391
        %828 = vmatpush1.msra.mxu0 %v389
        %829 = vmatprep.subr.mxu0 %v385
        %830 = vmatpush1.msra.mxu0 %v383
        %831 = vmatprep.subr.mxu0 %v379
        %832 = vmatpush1.msra.mxu0 %v377
        %833 = vmatprep.subr.mxu0 %v373
        %834 = vmatpush1.msra.mxu0 %v371
        %835 = vmatprep.subr.mxu0 %v367
        %836 = vmatpush1.msra.mxu0 %v365
        %837 = vmatprep.subr.mxu0 0.0
        %838 = vmatpush2.msra.mxu0 0.0
        %839 = vmatprep.subr.mxu0 0.0
        %840 = vmatpush2.msra.mxu0 0.0
        %841 = vmatprep.subr.mxu0 0.0
        %842 = vmatpush2.msra.mxu0 0.0
        %843 = vmatprep.subr.mxu0 0.0
        %844 = vmatpush2.msra.mxu0 0.0
        %845 = vmatprep.subr.mxu0 0.0
        %846 = vmatpush2.msra.mxu0 0.0
        %847 = vmatprep.subr.mxu0 0.0
        %848 = vmatpush2.msra.mxu0 0.0
        %849 = vmatprep.subr.mxu0 0.0
        %850 = vmatpush2.msra.mxu0 0.0
        %851 = vmatprep.subr.mxu0 0.0
        %852 = vmatpush2.msra.mxu0 0.0
        %853 = vmatprep.subr.mxu0 0.0
        %854 = vmatpush2.msra.mxu0 0.0
        %855 = vmatprep.subr.mxu0 0.0
        %856 = vmatpush2.msra.mxu0 0.0
        %857 = vmatprep.subr.mxu0 0.0
        %858 = vmatpush2.msra.mxu0 0.0
        %859 = vmatprep.subr.mxu0 0.0
        %860 = vmatpush2.msra.mxu0 0.0
        %861 = vmatprep.subr.mxu0 0.0
        %862 = vmatpush2.msra.mxu0 0.0
        %863 = vmatprep.subr.mxu0 0.0
        %864 = vmatpush2.msra.mxu0 0.0
        %865 = vmatprep.subr.mxu0 0.0
        %866 = vmatpush2.msra.mxu0 0.0
        %867 = vmatprep.subr.mxu0 0.0
        %868 = vmatpush2.msra.mxu0 0.0
        %869 = vmatprep.mubr.f32.mxu0 0.0
        %870 = vmatmul.mubr.f32.gmra.mxu0 %v710
        %v871 = vpop.f32.mrf.mxu0
        %v872 = vadd.f32 0.0, %v871
        %v873 = vpop.f32.mrf.mxu0
        %v874 = vadd.f32 0.0, %v873
        %875 = vmatprep.mubr.f32.mxu0 0.0
        %876 = vmatmul.mubr.f32.gmra.mxu0 %v713
        %v877 = vpop.f32.mrf.mxu0
        %v878 = vadd.f32 0.0, %v877
        %v879 = vpop.f32.mrf.mxu0
        %v880 = vadd.f32 0.0, %v879
        %881 = vmatprep.mubr.f32.mxu0 0.0
        %882 = vmatmul.mubr.f32.gmra.mxu0 %v716
        %v883 = vpop.f32.mrf.mxu0
        %v884 = vadd.f32 0.0, %v883
        %v885 = vpop.f32.mrf.mxu0
        %v886 = vadd.f32 0.0, %v885
        %887 = vmatprep.mubr.f32.mxu0 0.0
        %888 = vmatmul.mubr.f32.gmra.mxu0 %v719
        %v889 = vpop.f32.mrf.mxu0
        %v890 = vadd.f32 0.0, %v889
        %v891 = vpop.f32.mrf.mxu0
        %v892 = vadd.f32 0.0, %v891
        %893 = vmatprep.mubr.f32.mxu0 0.0
        %894 = vmatmul.mubr.f32.gmra.mxu0 %v722
        %v895 = vpop.f32.mrf.mxu0
        %v896 = vadd.f32 0.0, %v895
        %v897 = vpop.f32.mrf.mxu0
        %v898 = vadd.f32 0.0, %v897
        %899 = vmatprep.mubr.f32.mxu0 0.0
        %900 = vmatmul.mubr.f32.gmra.mxu0 %v725
        %v901 = vpop.f32.mrf.mxu0
        %v902 = vadd.f32 0.0, %v901
        %v903 = vpop.f32.mrf.mxu0
        %v904 = vadd.f32 0.0, %v903
        %905 = vmatprep.mubr.f32.mxu0 0.0
        %906 = vmatmul.mubr.f32.gmra.mxu0 %v728
        %v907 = vpop.f32.mrf.mxu0
        %v908 = vadd.f32 0.0, %v907
        %v909 = vpop.f32.mrf.mxu0
        %v910 = vadd.f32 0.0, %v909
        %911 = vmatprep.mubr.f32.mxu0 0.0
        %912 = vmatmul.mubr.f32.gmra.mxu0 %v731
        %v913 = vpop.f32.mrf.mxu0
        %v914 = vadd.f32 0.0, %v913
        %v915 = vpop.f32.mrf.mxu0
        %v916 = vadd.f32 0.0, %v915
        %917 = vmatprep.mubr.f32.mxu0 0.0
        %918 = vmatmul.mubr.f32.gmra.mxu0 %v734
        %v919 = vpop.f32.mrf.mxu0
        %v920 = vadd.f32 0.0, %v919
        %v921 = vpop.f32.mrf.mxu0
        %v922 = vadd.f32 0.0, %v921
        %923 = vmatprep.mubr.f32.mxu0 0.0
        %924 = vmatmul.mubr.f32.gmra.mxu0 %v737
        %v925 = vpop.f32.mrf.mxu0
        %v926 = vadd.f32 0.0, %v925
        %v927 = vpop.f32.mrf.mxu0
        %v928 = vadd.f32 0.0, %v927
        %929 = vmatprep.mubr.f32.mxu0 0.0
        %930 = vmatmul.mubr.f32.gmra.mxu0 %v740
        %v931 = vpop.f32.mrf.mxu0
        %v932 = vadd.f32 0.0, %v931
        %v933 = vpop.f32.mrf.mxu0
        %v934 = vadd.f32 0.0, %v933
        %935 = vmatprep.mubr.f32.mxu0 0.0
        %936 = vmatmul.mubr.f32.gmra.mxu0 %v743
        %v937 = vpop.f32.mrf.mxu0
        %v938 = vadd.f32 0.0, %v937
        %v939 = vpop.f32.mrf.mxu0
        %v940 = vadd.f32 0.0, %v939
        %941 = vmatprep.mubr.f32.mxu0 0.0
        %942 = vmatmul.mubr.f32.gmra.mxu0 %v746
        %v943 = vpop.f32.mrf.mxu0
        %v944 = vadd.f32 0.0, %v943
        %v945 = vpop.f32.mrf.mxu0
        %v946 = vadd.f32 0.0, %v945
        %947 = vmatprep.mubr.f32.mxu0 0.0
        %948 = vmatmul.mubr.f32.gmra.mxu0 %v749
        %v949 = vpop.f32.mrf.mxu0
        %v950 = vadd.f32 0.0, %v949
        %v951 = vpop.f32.mrf.mxu0
        %v952 = vadd.f32 0.0, %v951
        %953 = vmatprep.mubr.f32.mxu0 0.0
        %954 = vmatmul.mubr.f32.gmra.mxu0 %v752
        %v955 = vpop.f32.mrf.mxu0
        %v956 = vadd.f32 0.0, %v955
        %v957 = vpop.f32.mrf.mxu0
        %v958 = vadd.f32 0.0, %v957
        %959 = vmatprep.mubr.f32.mxu0 0.0
        %960 = vmatmul.mubr.f32.gmra.mxu0 %v755
        %v961 = vpop.f32.mrf.mxu0
        %v962 = vadd.f32 0.0, %v961
        %v963 = vpop.f32.mrf.mxu0
        %v964 = vadd.f32 0.0, %v963
        %965 = vmatprep.mubr.f32.mxu0 0.0
        %966 = vmatmul.mubr.f32.gmra.mxu0 %v758
        %v967 = vpop.f32.mrf.mxu0
        %v968 = vadd.f32 0.0, %v967
        %v969 = vpop.f32.mrf.mxu0
        %v970 = vadd.f32 0.0, %v969
        %971 = vmatprep.mubr.f32.mxu0 0.0
        %972 = vmatmul.mubr.f32.gmra.mxu0 %v761
        %v973 = vpop.f32.mrf.mxu0
        %v974 = vadd.f32 0.0, %v973
        %v975 = vpop.f32.mrf.mxu0
        %v976 = vadd.f32 0.0, %v975
        %977 = vmatprep.mubr.f32.mxu0 0.0
        %978 = vmatmul.mubr.f32.gmra.mxu0 %v764
        %v979 = vpop.f32.mrf.mxu0
        %v980 = vadd.f32 0.0, %v979
        %v981 = vpop.f32.mrf.mxu0
        %v982 = vadd.f32 0.0, %v981
        %983 = vmatprep.mubr.f32.mxu0 0.0
        %984 = vmatmul.mubr.f32.gmra.mxu0 %v767
        %v985 = vpop.f32.mrf.mxu0
        %v986 = vadd.f32 0.0, %v985
        %v987 = vpop.f32.mrf.mxu0
        %v988 = vadd.f32 0.0, %v987
        %989 = vmatprep.mubr.f32.mxu0 0.0
        %990 = vmatmul.mubr.f32.gmra.mxu0 %v770
        %v991 = vpop.f32.mrf.mxu0
        %v992 = vadd.f32 0.0, %v991
        %v993 = vpop.f32.mrf.mxu0
        %v994 = vadd.f32 0.0, %v993
        %995 = vmatprep.mubr.f32.mxu0 0.0
        %996 = vmatmul.mubr.f32.gmra.mxu0 %v773
        %v997 = vpop.f32.mrf.mxu0
        %v998 = vadd.f32 0.0, %v997
        %v999 = vpop.f32.mrf.mxu0
        %v1000 = vadd.f32 0.0, %v999
        %1001 = vmatprep.mubr.f32.mxu0 0.0
        %1002 = vmatmul.mubr.f32.gmra.mxu0 %v776
        %v1003 = vpop.f32.mrf.mxu0
        %v1004 = vadd.f32 0.0, %v1003
        %v1005 = vpop.f32.mrf.mxu0
        %v1006 = vadd.f32 0.0, %v1005
        %1007 = vmatprep.mubr.f32.mxu0 0.0
        %1008 = vmatmul.mubr.f32.gmra.mxu0 %v779
        %v1009 = vpop.f32.mrf.mxu0
        %v1010 = vadd.f32 0.0, %v1009
        %v1011 = vpop.f32.mrf.mxu0
        %v1012 = vadd.f32 0.0, %v1011
        %1013 = vmatprep.mubr.f32.mxu0 0.0
        %1014 = vmatmul.mubr.f32.gmra.mxu0 %v782
        %v1015 = vpop.f32.mrf.mxu0
        %v1016 = vadd.f32 0.0, %v1015
        %v1017 = vpop.f32.mrf.mxu0
        %v1018 = vadd.f32 0.0, %v1017
        %1019 = vmatprep.mubr.f32.mxu0 0.0
        %1020 = vmatmul.mubr.f32.gmra.mxu0 %v785
        %v1021 = vpop.f32.mrf.mxu0
        %v1022 = vadd.f32 0.0, %v1021
        %v1023 = vpop.f32.mrf.mxu0
        %v1024 = vadd.f32 0.0, %v1023
        %1025 = vmatprep.mubr.f32.mxu0 0.0
        %1026 = vmatmul.mubr.f32.gmra.mxu0 %v788
        %v1027 = vpop.f32.mrf.mxu0
        %v1028 = vadd.f32 0.0, %v1027
        %v1029 = vpop.f32.mrf.mxu0
        %v1030 = vadd.f32 0.0, %v1029
        %1031 = vmatprep.mubr.f32.mxu0 0.0
        %1032 = vmatmul.mubr.f32.gmra.mxu0 %v791
        %v1033 = vpop.f32.mrf.mxu0
        %v1034 = vadd.f32 0.0, %v1033
        %v1035 = vpop.f32.mrf.mxu0
        %v1036 = vadd.f32 0.0, %v1035
        %1037 = vmatprep.mubr.f32.mxu0 0.0
        %1038 = vmatmul.mubr.f32.gmra.mxu0 %v794
        %v1039 = vpop.f32.mrf.mxu0
        %v1040 = vadd.f32 0.0, %v1039
        %v1041 = vpop.f32.mrf.mxu0
        %v1042 = vadd.f32 0.0, %v1041
        %1043 = vmatprep.mubr.f32.mxu0 0.0
        %1044 = vmatmul.mubr.f32.gmra.mxu0 %v797
        %v1045 = vpop.f32.mrf.mxu0
        %v1046 = vadd.f32 0.0, %v1045
        %v1047 = vpop.f32.mrf.mxu0
        %v1048 = vadd.f32 0.0, %v1047
        %1049 = vmatprep.mubr.f32.mxu0 0.0
        %1050 = vmatmul.mubr.f32.gmra.mxu0 %v800
        %v1051 = vpop.f32.mrf.mxu0
        %v1052 = vadd.f32 0.0, %v1051
        %v1053 = vpop.f32.mrf.mxu0
        %v1054 = vadd.f32 0.0, %v1053
        %1055 = vmatprep.mubr.f32.mxu0 0.0
        %1056 = vmatmul.mubr.f32.gmra.mxu0 %v803
        %v1057 = vpop.f32.mrf.mxu0
        %v1058 = vadd.f32 0.0, %v1057
        %v1059 = vpop.f32.mrf.mxu0
        %v1060 = vadd.f32 0.0, %v1059
        %1061 = vdwg.mxu0
        %v1062 = vld [vmem:[#allocation7] sm:$0xff]
        %v1063 = vld [vmem:[#allocation7 + $0x8] sm:$0xff]
        %v1064 = vld [vmem:[#allocation7 + $0x10] sm:$0xff]
        %v1065 = vld [vmem:[#allocation7 + $0x18] sm:$0xff]
        %v1066 = vld [vmem:[#allocation7 + $0x20] sm:$0xff]
        %v1067 = vld [vmem:[#allocation7 + $0x28] sm:$0xff]
        %v1068 = vld [vmem:[#allocation7 + $0x30] sm:$0xff]
        %v1069 = vld [vmem:[#allocation7 + $0x38] sm:$0xff]
        %v1070 = vld [vmem:[#allocation7 + $0x40] sm:$0xff]
        %v1071 = vld [vmem:[#allocation7 + $0x48] sm:$0xff]
        %v1072 = vld [vmem:[#allocation7 + $0x50] sm:$0xff]
        %v1073 = vld [vmem:[#allocation7 + $0x58] sm:$0xff]
        %v1074 = vld [vmem:[#allocation7 + $0x60] sm:$0xff]
        %v1075 = vld [vmem:[#allocation7 + $0x68] sm:$0xff]
        %v1076 = vld [vmem:[#allocation7 + $0x70] sm:$0xff]
        %v1077 = vld [vmem:[#allocation7 + $0x78] sm:$0xff]
        %v1078 = vld [vmem:[#allocation7 + $0x80] sm:$0xff]
        %v1079 = vld [vmem:[#allocation7 + $0x88] sm:$0xff]
        %v1080 = vld [vmem:[#allocation7 + $0x90] sm:$0xff]
        %v1081 = vld [vmem:[#allocation7 + $0x98] sm:$0xff]
        %v1082 = vld [vmem:[#allocation7 + $0xa0] sm:$0xff]
        %v1083 = vld [vmem:[#allocation7 + $0xa8] sm:$0xff]
        %v1084 = vld [vmem:[#allocation7 + $0xb0] sm:$0xff]
        %v1085 = vld [vmem:[#allocation7 + $0xb8] sm:$0xff]
        %v1086 = vld [vmem:[#allocation7 + $0xc0] sm:$0xff]
        %v1087 = vld [vmem:[#allocation7 + $0xc8] sm:$0xff]
        %v1088 = vld [vmem:[#allocation7 + $0xd0] sm:$0xff]
        %v1089 = vld [vmem:[#allocation7 + $0xd8] sm:$0xff]
        %v1090 = vld [vmem:[#allocation7 + $0xe0] sm:$0xff]
        %v1091 = vld [vmem:[#allocation7 + $0xe8] sm:$0xff]
        %v1092 = vld [vmem:[#allocation7 + $0xf0] sm:$0xff]
        %v1093 = vld [vmem:[#allocation7 + $0xf8] sm:$0xff]
        %v1094 = vld [vmem:[#allocation7 + $0x100] sm:$0xff]
        %v1095 = vld [vmem:[#allocation7 + $0x108] sm:$0xff]
        %v1096 = vld [vmem:[#allocation7 + $0x110] sm:$0xff]
        %v1097 = vld [vmem:[#allocation7 + $0x118] sm:$0xff]
        %v1098 = vld [vmem:[#allocation7 + $0x120] sm:$0xff]
        %v1099 = vld [vmem:[#allocation7 + $0x128] sm:$0xff]
        %v1100 = vld [vmem:[#allocation7 + $0x130] sm:$0xff]
        %v1101 = vld [vmem:[#allocation7 + $0x138] sm:$0xff]
        %v1102 = vld [vmem:[#allocation7 + $0x140] sm:$0xff]
        %v1103 = vld [vmem:[#allocation7 + $0x148] sm:$0xff]
        %v1104 = vld [vmem:[#allocation7 + $0x150] sm:$0xff]
        %v1105 = vld [vmem:[#allocation7 + $0x158] sm:$0xff]
        %v1106 = vld [vmem:[#allocation7 + $0x160] sm:$0xff]
        %v1107 = vld [vmem:[#allocation7 + $0x168] sm:$0xff]
        %v1108 = vld [vmem:[#allocation7 + $0x170] sm:$0xff]
        %v1109 = vld [vmem:[#allocation7 + $0x178] sm:$0xff]
        %v1110 = vld [vmem:[#allocation7 + $0x180] sm:$0xff]
        %v1111 = vld [vmem:[#allocation7 + $0x188] sm:$0xff]
        %v1112 = vld [vmem:[#allocation7 + $0x190] sm:$0xff]
        %v1113 = vld [vmem:[#allocation7 + $0x198] sm:$0xff]
        %v1114 = vld [vmem:[#allocation7 + $0x1a0] sm:$0xff]
        %v1115 = vld [vmem:[#allocation7 + $0x1a8] sm:$0xff]
        %v1116 = vld [vmem:[#allocation7 + $0x1b0] sm:$0xff]
        %v1117 = vld [vmem:[#allocation7 + $0x1b8] sm:$0xff]
        %v1118 = vld [vmem:[#allocation7 + $0x1c0] sm:$0xff]
        %v1119 = vld [vmem:[#allocation7 + $0x1c8] sm:$0xff]
        %v1120 = vld [vmem:[#allocation7 + $0x1d0] sm:$0xff]
        %v1121 = vld [vmem:[#allocation7 + $0x1d8] sm:$0xff]
        %v1122 = vld [vmem:[#allocation7 + $0x1e0] sm:$0xff]
        %v1123 = vld [vmem:[#allocation7 + $0x1e8] sm:$0xff]
        %v1124 = vld [vmem:[#allocation7 + $0x1f0] sm:$0xff]
        %v1125 = vld [vmem:[#allocation7 + $0x1f8] sm:$0xff]
        %1126 = vmatprep.subr.mxu0 %v964
        %1127 = vmatpush1.msra.mxu0 %v962
        %1128 = vmatprep.subr.mxu0 %v958
        %1129 = vmatpush1.msra.mxu0 %v956
        %1130 = vmatprep.subr.mxu0 %v952
        %1131 = vmatpush1.msra.mxu0 %v950
        %1132 = vmatprep.subr.mxu0 %v946
        %1133 = vmatpush1.msra.mxu0 %v944
        %1134 = vmatprep.subr.mxu0 %v940
        %1135 = vmatpush1.msra.mxu0 %v938
        %1136 = vmatprep.subr.mxu0 %v934
        %1137 = vmatpush1.msra.mxu0 %v932
        %1138 = vmatprep.subr.mxu0 %v928
        %1139 = vmatpush1.msra.mxu0 %v926
        %1140 = vmatprep.subr.mxu0 %v922
        %1141 = vmatpush1.msra.mxu0 %v920
        %1142 = vmatprep.subr.mxu0 %v916
        %1143 = vmatpush1.msra.mxu0 %v914
        %1144 = vmatprep.subr.mxu0 %v910
        %1145 = vmatpush1.msra.mxu0 %v908
        %1146 = vmatprep.subr.mxu0 %v904
        %1147 = vmatpush1.msra.mxu0 %v902
        %1148 = vmatprep.subr.mxu0 %v898
        %1149 = vmatpush1.msra.mxu0 %v896
        %1150 = vmatprep.subr.mxu0 %v892
        %1151 = vmatpush1.msra.mxu0 %v890
        %1152 = vmatprep.subr.mxu0 %v886
        %1153 = vmatpush1.msra.mxu0 %v884
        %1154 = vmatprep.subr.mxu0 %v880
        %1155 = vmatpush1.msra.mxu0 %v878
        %1156 = vmatprep.subr.mxu0 %v874
        %1157 = vmatpush1.msra.mxu0 %v872
        %1158 = vmatprep.subr.mxu0 %v1060
        %1159 = vmatpush2.msra.mxu0 %v1058
        %1160 = vmatprep.subr.mxu0 %v1054
        %1161 = vmatpush2.msra.mxu0 %v1052
        %1162 = vmatprep.subr.mxu0 %v1048
        %1163 = vmatpush2.msra.mxu0 %v1046
        %1164 = vmatprep.subr.mxu0 %v1042
        %1165 = vmatpush2.msra.mxu0 %v1040
        %1166 = vmatprep.subr.mxu0 %v1036
        %1167 = vmatpush2.msra.mxu0 %v1034
        %1168 = vmatprep.subr.mxu0 %v1030
        %1169 = vmatpush2.msra.mxu0 %v1028
        %1170 = vmatprep.subr.mxu0 %v1024
        %1171 = vmatpush2.msra.mxu0 %v1022
        %1172 = vmatprep.subr.mxu0 %v1018
        %1173 = vmatpush2.msra.mxu0 %v1016
        %1174 = vmatprep.subr.mxu0 %v1012
        %1175 = vmatpush2.msra.mxu0 %v1010
        %1176 = vmatprep.subr.mxu0 %v1006
        %1177 = vmatpush2.msra.mxu0 %v1004
        %1178 = vmatprep.subr.mxu0 %v1000
        %1179 = vmatpush2.msra.mxu0 %v998
        %1180 = vmatprep.subr.mxu0 %v994
        %1181 = vmatpush2.msra.mxu0 %v992
        %1182 = vmatprep.subr.mxu0 %v988
        %1183 = vmatpush2.msra.mxu0 %v986
        %1184 = vmatprep.subr.mxu0 %v982
        %1185 = vmatpush2.msra.mxu0 %v980
        %1186 = vmatprep.subr.mxu0 %v976
        %1187 = vmatpush2.msra.mxu0 %v974
        %1188 = vmatprep.subr.mxu0 %v970
        %1189 = vmatpush2.msra.mxu0 %v968
        %1190 = vmatprep.mubr.f32.mxu0 %v1063
        %1191 = vmatmul.mubr.f32.gmra.mxu0 %v1062
        %v1192 = vpop.f32.mrf.mxu0
        %v1193 = vadd.f32 %v218, %v1192
        %v1194 = vpop.f32.mrf.mxu0
        %v1195 = vadd.f32 %v219, %v1194
        %1196 = vmatprep.mubr.f32.mxu0 %v1065
        %1197 = vmatmul.mubr.f32.gmra.mxu0 %v1064
        %v1198 = vpop.f32.mrf.mxu0
        %v1199 = vadd.f32 %v220, %v1198
        %v1200 = vpop.f32.mrf.mxu0
        %v1201 = vadd.f32 %v221, %v1200
        %1202 = vmatprep.mubr.f32.mxu0 %v1067
        %1203 = vmatmul.mubr.f32.gmra.mxu0 %v1066
        %v1204 = vpop.f32.mrf.mxu0
        %v1205 = vadd.f32 %v222, %v1204
        %v1206 = vpop.f32.mrf.mxu0
        %v1207 = vadd.f32 %v223, %v1206
        %1208 = vmatprep.mubr.f32.mxu0 %v1069
        %1209 = vmatmul.mubr.f32.gmra.mxu0 %v1068
        %v1210 = vpop.f32.mrf.mxu0
        %v1211 = vadd.f32 %v224, %v1210
        %v1212 = vpop.f32.mrf.mxu0
        %v1213 = vadd.f32 %v225, %v1212
        %1214 = vmatprep.mubr.f32.mxu0 %v1071
        %1215 = vmatmul.mubr.f32.gmra.mxu0 %v1070
        %v1216 = vpop.f32.mrf.mxu0
        %v1217 = vadd.f32 %v226, %v1216
        %v1218 = vpop.f32.mrf.mxu0
        %v1219 = vadd.f32 %v227, %v1218
        %1220 = vmatprep.mubr.f32.mxu0 %v1073
        %1221 = vmatmul.mubr.f32.gmra.mxu0 %v1072
        %v1222 = vpop.f32.mrf.mxu0
        %v1223 = vadd.f32 %v228, %v1222
        %v1224 = vpop.f32.mrf.mxu0
        %v1225 = vadd.f32 %v229, %v1224
        %1226 = vmatprep.mubr.f32.mxu0 %v1075
        %1227 = vmatmul.mubr.f32.gmra.mxu0 %v1074
        %v1228 = vpop.f32.mrf.mxu0
        %v1229 = vadd.f32 %v230, %v1228
        %v1230 = vpop.f32.mrf.mxu0
        %v1231 = vadd.f32 %v231, %v1230
        %1232 = vmatprep.mubr.f32.mxu0 %v1077
        %1233 = vmatmul.mubr.f32.gmra.mxu0 %v1076
        %v1234 = vpop.f32.mrf.mxu0
        %v1235 = vadd.f32 %v232, %v1234
        %v1236 = vpop.f32.mrf.mxu0
        %v1237 = vadd.f32 %v233, %v1236
        %1238 = vmatprep.mubr.f32.mxu0 %v1079
        %1239 = vmatmul.mubr.f32.gmra.mxu0 %v1078
        %v1240 = vpop.f32.mrf.mxu0
        %v1241 = vadd.f32 %v234, %v1240
        %v1242 = vpop.f32.mrf.mxu0
        %v1243 = vadd.f32 %v235, %v1242
        %1244 = vmatprep.mubr.f32.mxu0 %v1081
        %1245 = vmatmul.mubr.f32.gmra.mxu0 %v1080
        %v1246 = vpop.f32.mrf.mxu0
        %v1247 = vadd.f32 %v236, %v1246
        %v1248 = vpop.f32.mrf.mxu0
        %v1249 = vadd.f32 %v237, %v1248
        %1250 = vmatprep.mubr.f32.mxu0 %v1083
        %1251 = vmatmul.mubr.f32.gmra.mxu0 %v1082
        %v1252 = vpop.f32.mrf.mxu0
        %v1253 = vadd.f32 %v238, %v1252
        %v1254 = vpop.f32.mrf.mxu0
        %v1255 = vadd.f32 %v239, %v1254
        %1256 = vmatprep.mubr.f32.mxu0 %v1085
        %1257 = vmatmul.mubr.f32.gmra.mxu0 %v1084
        %v1258 = vpop.f32.mrf.mxu0
        %v1259 = vadd.f32 %v240, %v1258
        %v1260 = vpop.f32.mrf.mxu0
        %v1261 = vadd.f32 %v241, %v1260
        %1262 = vmatprep.mubr.f32.mxu0 %v1087
        %1263 = vmatmul.mubr.f32.gmra.mxu0 %v1086
        %v1264 = vpop.f32.mrf.mxu0
        %v1265 = vadd.f32 %v242, %v1264
        %v1266 = vpop.f32.mrf.mxu0
        %v1267 = vadd.f32 %v243, %v1266
        %1268 = vmatprep.mubr.f32.mxu0 %v1089
        %1269 = vmatmul.mubr.f32.gmra.mxu0 %v1088
        %v1270 = vpop.f32.mrf.mxu0
        %v1271 = vadd.f32 %v244, %v1270
        %v1272 = vpop.f32.mrf.mxu0
        %v1273 = vadd.f32 %v245, %v1272
        %1274 = vmatprep.mubr.f32.mxu0 %v1091
        %1275 = vmatmul.mubr.f32.gmra.mxu0 %v1090
        %v1276 = vpop.f32.mrf.mxu0
        %v1277 = vadd.f32 %v246, %v1276
        %v1278 = vpop.f32.mrf.mxu0
        %v1279 = vadd.f32 %v247, %v1278
        %1280 = vmatprep.mubr.f32.mxu0 %v1093
        %1281 = vmatmul.mubr.f32.gmra.mxu0 %v1092
        %v1282 = vpop.f32.mrf.mxu0
        %v1283 = vadd.f32 %v248, %v1282
        %v1284 = vpop.f32.mrf.mxu0
        %v1285 = vadd.f32 %v249, %v1284
        %1286 = vmatprep.mubr.f32.mxu0 %v1095
        %1287 = vmatmul.mubr.f32.gmra.mxu0 %v1094
        %v1288 = vpop.f32.mrf.mxu0
        %v1289 = vadd.f32 %v250, %v1288
        %v1290 = vpop.f32.mrf.mxu0
        %v1291 = vadd.f32 %v251, %v1290
        %1292 = vmatprep.mubr.f32.mxu0 %v1097
        %1293 = vmatmul.mubr.f32.gmra.mxu0 %v1096
        %v1294 = vpop.f32.mrf.mxu0
        %v1295 = vadd.f32 %v252, %v1294
        %v1296 = vpop.f32.mrf.mxu0
        %v1297 = vadd.f32 %v253, %v1296
        %1298 = vmatprep.mubr.f32.mxu0 %v1099
        %1299 = vmatmul.mubr.f32.gmra.mxu0 %v1098
        %v1300 = vpop.f32.mrf.mxu0
        %v1301 = vadd.f32 %v254, %v1300
        %v1302 = vpop.f32.mrf.mxu0
        %v1303 = vadd.f32 %v255, %v1302
        %1304 = vmatprep.mubr.f32.mxu0 %v1101
        %1305 = vmatmul.mubr.f32.gmra.mxu0 %v1100
        %v1306 = vpop.f32.mrf.mxu0
        %v1307 = vadd.f32 %v256, %v1306
        %v1308 = vpop.f32.mrf.mxu0
        %v1309 = vadd.f32 %v257, %v1308
        %1310 = vmatprep.mubr.f32.mxu0 %v1103
        %1311 = vmatmul.mubr.f32.gmra.mxu0 %v1102
        %v1312 = vpop.f32.mrf.mxu0
        %v1313 = vadd.f32 %v258, %v1312
        %v1314 = vpop.f32.mrf.mxu0
        %v1315 = vadd.f32 %v259, %v1314
        %1316 = vmatprep.mubr.f32.mxu0 %v1105
        %1317 = vmatmul.mubr.f32.gmra.mxu0 %v1104
        %v1318 = vpop.f32.mrf.mxu0
        %v1319 = vadd.f32 %v260, %v1318
        %v1320 = vpop.f32.mrf.mxu0
        %v1321 = vadd.f32 %v261, %v1320
        %1322 = vmatprep.mubr.f32.mxu0 %v1107
        %1323 = vmatmul.mubr.f32.gmra.mxu0 %v1106
        %v1324 = vpop.f32.mrf.mxu0
        %v1325 = vadd.f32 %v262, %v1324
        %v1326 = vpop.f32.mrf.mxu0
        %v1327 = vadd.f32 %v263, %v1326
        %1328 = vmatprep.mubr.f32.mxu0 %v1109
        %1329 = vmatmul.mubr.f32.gmra.mxu0 %v1108
        %v1330 = vpop.f32.mrf.mxu0
        %v1331 = vadd.f32 %v264, %v1330
        %v1332 = vpop.f32.mrf.mxu0
        %v1333 = vadd.f32 %v265, %v1332
        %1334 = vmatprep.mubr.f32.mxu0 %v1111
        %1335 = vmatmul.mubr.f32.gmra.mxu0 %v1110
        %v1336 = vpop.f32.mrf.mxu0
        %v1337 = vadd.f32 %v266, %v1336
        %v1338 = vpop.f32.mrf.mxu0
        %v1339 = vadd.f32 %v267, %v1338
        %1340 = vmatprep.mubr.f32.mxu0 %v1113
        %1341 = vmatmul.mubr.f32.gmra.mxu0 %v1112
        %v1342 = vpop.f32.mrf.mxu0
        %v1343 = vadd.f32 %v268, %v1342
        %v1344 = vpop.f32.mrf.mxu0
        %v1345 = vadd.f32 %v269, %v1344
        %1346 = vmatprep.mubr.f32.mxu0 %v1115
        %1347 = vmatmul.mubr.f32.gmra.mxu0 %v1114
        %v1348 = vpop.f32.mrf.mxu0
        %v1349 = vadd.f32 %v270, %v1348
        %v1350 = vpop.f32.mrf.mxu0
        %v1351 = vadd.f32 %v271, %v1350
        %1352 = vmatprep.mubr.f32.mxu0 %v1117
        %1353 = vmatmul.mubr.f32.gmra.mxu0 %v1116
        %v1354 = vpop.f32.mrf.mxu0
        %v1355 = vadd.f32 %v272, %v1354
        %v1356 = vpop.f32.mrf.mxu0
        %v1357 = vadd.f32 %v273, %v1356
        %1358 = vmatprep.mubr.f32.mxu0 %v1119
        %1359 = vmatmul.mubr.f32.gmra.mxu0 %v1118
        %v1360 = vpop.f32.mrf.mxu0
        %v1361 = vadd.f32 %v274, %v1360
        %v1362 = vpop.f32.mrf.mxu0
        %v1363 = vadd.f32 %v275, %v1362
        %1364 = vmatprep.mubr.f32.mxu0 %v1121
        %1365 = vmatmul.mubr.f32.gmra.mxu0 %v1120
        %v1366 = vpop.f32.mrf.mxu0
        %v1367 = vadd.f32 %v276, %v1366
        %v1368 = vpop.f32.mrf.mxu0
        %v1369 = vadd.f32 %v277, %v1368
        %1370 = vmatprep.mubr.f32.mxu0 %v1123
        %1371 = vmatmul.mubr.f32.gmra.mxu0 %v1122
        %v1372 = vpop.f32.mrf.mxu0
        %v1373 = vadd.f32 %v278, %v1372
        %v1374 = vpop.f32.mrf.mxu0
        %v1375 = vadd.f32 %v279, %v1374
        %1376 = vmatprep.mubr.f32.mxu0 %v1125
        %1377 = vmatmul.mubr.f32.gmra.mxu0 %v1124
        %v1378 = vpop.f32.mrf.mxu0
        %v1379 = vadd.f32 %v280, %v1378
        %v1380 = vpop.f32.mrf.mxu0
        %v1381 = vadd.f32 %v281, %v1380
        %1382 = vdwg.mxu0
        %1383 = vst [vmem:[%s217] sm:$0xff] %v1193
        %1384 = vst [vmem:[%s217 + $0x8] sm:$0xff] %v1195
        %1385 = vst [vmem:[%s217 + $0x10] sm:$0xff] %v1199
        %1386 = vst [vmem:[%s217 + $0x18] sm:$0xff] %v1201
        %1387 = vst [vmem:[%s217 + $0x20] sm:$0xff] %v1205
        %1388 = vst [vmem:[%s217 + $0x28] sm:$0xff] %v1207
        %1389 = vst [vmem:[%s217 + $0x30] sm:$0xff] %v1211
        %1390 = vst [vmem:[%s217 + $0x38] sm:$0xff] %v1213
        %1391 = vst [vmem:[%s217 + $0x40] sm:$0xff] %v1217
        %1392 = vst [vmem:[%s217 + $0x48] sm:$0xff] %v1219
        %1393 = vst [vmem:[%s217 + $0x50] sm:$0xff] %v1223
        %1394 = vst [vmem:[%s217 + $0x58] sm:$0xff] %v1225
        %1395 = vst [vmem:[%s217 + $0x60] sm:$0xff] %v1229
        %1396 = vst [vmem:[%s217 + $0x68] sm:$0xff] %v1231
        %1397 = vst [vmem:[%s217 + $0x70] sm:$0xff] %v1235
        %1398 = vst [vmem:[%s217 + $0x78] sm:$0xff] %v1237
        %1399 = vst [vmem:[%s217 + $0x80] sm:$0xff] %v1241
        %1400 = vst [vmem:[%s217 + $0x88] sm:$0xff] %v1243
        %1401 = vst [vmem:[%s217 + $0x90] sm:$0xff] %v1247
        %1402 = vst [vmem:[%s217 + $0x98] sm:$0xff] %v1249
        %1403 = vst [vmem:[%s217 + $0xa0] sm:$0xff] %v1253
        %1404 = vst [vmem:[%s217 + $0xa8] sm:$0xff] %v1255
        %1405 = vst [vmem:[%s217 + $0xb0] sm:$0xff] %v1259
        %1406 = vst [vmem:[%s217 + $0xb8] sm:$0xff] %v1261
        %1407 = vst [vmem:[%s217 + $0xc0] sm:$0xff] %v1265
        %1408 = vst [vmem:[%s217 + $0xc8] sm:$0xff] %v1267
        %1409 = vst [vmem:[%s217 + $0xd0] sm:$0xff] %v1271
        %1410 = vst [vmem:[%s217 + $0xd8] sm:$0xff] %v1273
        %1411 = vst [vmem:[%s217 + $0xe0] sm:$0xff] %v1277
        %1412 = vst [vmem:[%s217 + $0xe8] sm:$0xff] %v1279
        %1413 = vst [vmem:[%s217 + $0xf0] sm:$0xff] %v1283
        %1414 = vst [vmem:[%s217 + $0xf8] sm:$0xff] %v1285
        %1415 = vst [vmem:[%s217 + $0x100] sm:$0xff] %v1289
        %1416 = vst [vmem:[%s217 + $0x108] sm:$0xff] %v1291
        %1417 = vst [vmem:[%s217 + $0x110] sm:$0xff] %v1295
        %1418 = vst [vmem:[%s217 + $0x118] sm:$0xff] %v1297
        %1419 = vst [vmem:[%s217 + $0x120] sm:$0xff] %v1301
        %1420 = vst [vmem:[%s217 + $0x128] sm:$0xff] %v1303
        %1421 = vst [vmem:[%s217 + $0x130] sm:$0xff] %v1307
        %1422 = vst [vmem:[%s217 + $0x138] sm:$0xff] %v1309
        %1423 = vst [vmem:[%s217 + $0x140] sm:$0xff] %v1313
        %1424 = vst [vmem:[%s217 + $0x148] sm:$0xff] %v1315
        %1425 = vst [vmem:[%s217 + $0x150] sm:$0xff] %v1319
        %1426 = vst [vmem:[%s217 + $0x158] sm:$0xff] %v1321
        %1427 = vst [vmem:[%s217 + $0x160] sm:$0xff] %v1325
        %1428 = vst [vmem:[%s217 + $0x168] sm:$0xff] %v1327
        %1429 = vst [vmem:[%s217 + $0x170] sm:$0xff] %v1331
        %1430 = vst [vmem:[%s217 + $0x178] sm:$0xff] %v1333
        %1431 = vst [vmem:[%s217 + $0x180] sm:$0xff] %v1337
        %1432 = vst [vmem:[%s217 + $0x188] sm:$0xff] %v1339
        %1433 = vst [vmem:[%s217 + $0x190] sm:$0xff] %v1343
        %1434 = vst [vmem:[%s217 + $0x198] sm:$0xff] %v1345
        %1435 = vst [vmem:[%s217 + $0x1a0] sm:$0xff] %v1349
        %1436 = vst [vmem:[%s217 + $0x1a8] sm:$0xff] %v1351
        %1437 = vst [vmem:[%s217 + $0x1b0] sm:$0xff] %v1355
        %1438 = vst [vmem:[%s217 + $0x1b8] sm:$0xff] %v1357
        %1439 = vst [vmem:[%s217 + $0x1c0] sm:$0xff] %v1361
        %1440 = vst [vmem:[%s217 + $0x1c8] sm:$0xff] %v1363
        %1441 = vst [vmem:[%s217 + $0x1d0] sm:$0xff] %v1367
        %1442 = vst [vmem:[%s217 + $0x1d8] sm:$0xff] %v1369
        %1443 = vst [vmem:[%s217 + $0x1e0] sm:$0xff] %v1373
        %1444 = vst [vmem:[%s217 + $0x1e8] sm:$0xff] %v1375
        %1445 = vst [vmem:[%s217 + $0x1f0] sm:$0xff] %v1379
        %1446 = vst [vmem:[%s217 + $0x1f8] sm:$0xff] %v1381
        %s1447 = sand.u32 %s97, 1
        %s1448 = scalar_lea.sflag [#allocation4], %s1447
        %s1449 = sand.u32 %s97, 1
        %s1450 = smul.addr %s1449, 512
        %s1451 = scalar_lea.vmem [#allocation8], %s1450
        // Predicated region
        $region45: #{tpu_custom_call.1} parent=31 // pred_check
          %p1452 = pneg %p107
        $region46: #{tpu_custom_call.1} parent=31 // pred_check_branch
          %1454 = sbr.rel (%p1452) target = $region48
        $region47: #{tpu_custom_call.1} parent=31 // pred_region
          %s1456 = ssub.s32 8192, 8192
          %1457 = vsyncadd %s1448, %s1456
          %s1458 = smul.addr %s21, 64
          %s1459 = smul.addr %s1458, 128
          %s1460 = scalar_lea.hbm %s3, %s1459
          %s1461 = sshll.u32 %s1451, 4
          %s1462 = int_to_ptr.vmem [resolvable:$true] %s1461
          %1467 = dma.vmem_to_hbm [thread:$0]  %s1462, 8192, %s1460, %s1448, 256, 256, 16
        $region48: #{tpu_custom_call.1} parent=31 // pred_fallthru
          _
      $region32: #{tpu_custom_call.1} parent=5 // pred_fallthru
        _
      %p1468 = scmp.le.s32.totalorder 2, %s16
      // Predicated region
      $region49: #{tpu_custom_call.1} parent=5 // pred_check
        %p1469 = pneg %p1468
      $region50: #{tpu_custom_call.1} parent=5 // pred_check_branch
        %1471 = sbr.rel (%p1469) target = $region52
      $region51: #{tpu_custom_call.1} parent=5 // pred_region
        %s1472 = ssub.s32 %s16, 2
        // Predicated region
        $region53: #{tpu_custom_call.1} parent=51 // pred_check
          %p1473 = pneg %p113
        $region54: #{tpu_custom_call.1} parent=51 // pred_check_branch
          %1475 = sbr.rel (%p1473) target = $region56
        $region55: #{tpu_custom_call.1} parent=51 // pred_region
          %s1476 = sand.u32 %s98, 1
          %s1477 = scalar_lea.sflag [#allocation4], %s1476
          %s1478 = sand.u32 %s98, 1
          %s1479 = smul.addr %s1478, 512
          %s1480 = scalar_lea.vmem [#allocation8], %s1479
          %1481 = dma.done %s1477, 8192
        $region56: #{tpu_custom_call.1} parent=51 // pred_fallthru
          _
      $region52: #{tpu_custom_call.1} parent=5 // pred_fallthru
        _
    $region6: #{tpu_custom_call.1} parent=1 // loop_footer
      %s20 = sadd.s32 1, %s16
    $region7: #{tpu_custom_call.1} parent=1 // loop_footer_branch
      %15 = sbr.rel target = $region3
    $region8: #{tpu_custom_call.1} parent=1 // loop_exit
      _
    %1482 = vsyncpa [#allocation3], 1
    %s1483 = scalar_lea.sflag [#allocation3], 1
    %1484 = vsyncpa %s1483, 1
    %1485 = vsyncpa [#allocation6], 1
    %1486 = vsyncpa [#allocation4], 1
    %s1487 = scalar_lea.sflag [#allocation4], 1
    %1488 = vsyncpa %s1487, 1

</llo_original>
